<compile_context>
chip_gen: v5e
topology: v5e:2x2
jax: 0.10.0
libtpu: 0.0.40
codegen_flags: <defaults>
</compile_context>

<pallas_src>
import functools

import jax
import jax.numpy as jnp
from jax.experimental import pallas as pl
from jax.experimental.pallas import tpu as pltpu


def _shsa_kernel(x_ref, wqkv_ref, bqkv_ref, wproj_ref, o_ref, *,
                 pdim, qk_dim, eps, q_chunk):
    """One (Bt, C, N) batch block per grid step.  N lives in the lane dim."""
    bt, C, N = x_ref.shape
    n_chunks = N // q_chunk

    wqkv = wqkv_ref[...]                      # (2*qk+pdim+1, pdim)  bf16
    bqkv = bqkv_ref[...]                      # (2*qk+pdim+1, 1)     f32
    wproj = wproj_ref[...]                    # (C, C+1)             bf16 (bias col last)
    # Hoisted constant (broadcasts are not CSE'd if created inside the loops).
    ones_row = jnp.ones((1, q_chunk), jnp.bfloat16)

    for b in range(bt):                       # small static batch loop
        x = x_ref[b].astype(jnp.float32)      # (C, N)
        x1 = x[:pdim, :]                      # (pdim, N)   sublane slice
        x2 = x[pdim:, :]                      # (C-pdim, N) sublane slice

        # GroupNorm(1, pdim): one-pass statistics over all pdim*N elements.
        # The affine (gamma/beta) is folded into W_qkv / b_qkv at prep time.
        mean = jnp.mean(x1)
        var = jnp.maximum(jnp.mean(x1 * x1) - mean * mean, 0.0)
        x1n = ((x1 - mean) * jax.lax.rsqrt(var + eps)).astype(jnp.bfloat16)

        # qkv 1x1 conv (+ folded BN / GN-affine / attention scale) as a channel
        # matmul.  Extra output row (zero weights, bias 1.0) => constant-1 row.
        qkv = jnp.dot(wqkv, x1n, preferred_element_type=jnp.float32) + bqkv
        q = qkv[:qk_dim, :].astype(jnp.bfloat16)             # (qk, N) scale folded
        k = qkv[qk_dim:2 * qk_dim, :].astype(jnp.bfloat16)   # (qk, N)
        v1 = qkv[2 * qk_dim:, :].astype(jnp.bfloat16)        # (pdim+1, N), last row == 1

        relu_x2 = jnp.maximum(x2, 0.0).astype(jnp.bfloat16)  # (C-pdim, N)

        for c in range(n_chunks):             # 128-wide query-column slabs
            sl = slice(c * q_chunk, (c + 1) * q_chunk)
            # logits[m, n] = k[:, m] . q_scaled[:, n]  (softmax over m, the keys)
            logits = jax.lax.dot_general(
                k, q[:, sl], (((0,), (0,)), ((), ())),
                preferred_element_type=jnp.float32)           # (N, q_chunk) f32
            logits = logits - jnp.max(logits, axis=0, keepdims=True)
            p = jnp.exp(logits.astype(jnp.bfloat16))          # bf16 numerator
            # [v; 1] @ p: rows :pdim are the unnormalized outputs, row pdim is
            # the softmax denominator (column sums) -- straight from the MXU.
            r = jnp.dot(v1, p, preferred_element_type=jnp.float32)  # (pdim+1, q_chunk)
            inv = pl.reciprocal(r[pdim:pdim + 1, :], approx=True)   # (1, q_chunk)
            x1o = jnp.maximum(r[:pdim, :] * inv, 0.0).astype(jnp.bfloat16)
            # Merged projection over concat([relu(x1o), relu(x2), 1]); the proj
            # bias rides in the last weight column against the ones row.
            h = jnp.concatenate([x1o, relu_x2[:, sl], ones_row], axis=0)  # (C+1, q_chunk)
            out = jnp.dot(wproj, h, preferred_element_type=jnp.float32)   # (C, q_chunk)
            o_ref[b, :, sl] = out.astype(o_ref.dtype)


def _grid_batch_block(B):
    """All batches in one grid step on single-TC chips (v5e/v6e); two steps on
    v7x so both TensorCores get work via the 'parallel' batch axis."""
    try:
        kind = jax.devices()[0].device_kind.lower()
        multi_tc = "v7" in kind
    except Exception:  # pragma: no cover - conservative fallback
        multi_tc = False
    if multi_tc and B % 2 == 0:
        return B // 2
    return B


def shsa_forward(x_nchw, prepped_params, *, qk_dim, pdim, batch_block=None):
    """Pallas SHSA forward.  x_nchw: (B, C, H, W) float32."""
    B, C, H, W = x_nchw.shape
    N = H * W
    assert C % 8 == 0 and pdim % 8 == 0 and qk_dim % 8 == 0, \
        "sublane-aligned channel splits need C, pdim, qk_dim % 8 == 0"
    assert N % 128 == 0, "lane-dense layout needs H*W % 128 == 0"
    assert 0 < pdim < C

    w_qkv, b_qkv, w_proj_aug = prepped_params
    qkv_rows = 2 * qk_dim + pdim + 1          # +1: constant-one (denominator) row

    if batch_block is None:
        batch_block = _grid_batch_block(B)
    assert B % batch_block == 0
    n_steps = B // batch_block
    q_chunk = 128

    x = x_nchw.reshape(B, C, N)               # channels-first, no transpose
    kernel = functools.partial(_shsa_kernel, pdim=pdim, qk_dim=qk_dim,
                               eps=1e-5, q_chunk=q_chunk)

    out = pl.pallas_call(
        kernel,
        out_shape=jax.ShapeDtypeStruct((B, C, N), x.dtype),
        grid_spec=pltpu.PrefetchScalarGridSpec(
            num_scalar_prefetch=0,
            grid=(n_steps,),
            in_specs=[
                pl.BlockSpec((batch_block, C, N), lambda i: (i, 0, 0)),  # x
                pl.BlockSpec((qkv_rows, pdim), lambda i: (0, 0)),        # W_qkv (bf16)
                pl.BlockSpec((qkv_rows, 1), lambda i: (0, 0)),           # b_qkv (f32)
                pl.BlockSpec((C, C + 1), lambda i: (0, 0)),              # W_proj|b (bf16)
            ],
            out_specs=pl.BlockSpec((batch_block, C, N), lambda i: (i, 0, 0)),
        ),
        compiler_params=pltpu.CompilerParams(
            dimension_semantics=("parallel",)),
    )(x, w_qkv, b_qkv, w_proj_aug)

    return out.reshape(B, C, H, W)


def init_params(key, dim, qk_dim, pdim):
    """Logical (PyTorch-style) params.  Conv2d_BN is emulated in eval mode with
    random running stats folded into an effective (out, in) weight + bias (BN
    gamma=1, beta=0 as set by the module's __init__); GroupNorm affine is kept
    separate (non-trivial, to exercise the fold)."""
    ks = jax.random.split(key, 8)
    bn_eps = 1e-5
    qkv_out = 2 * qk_dim + pdim

    gn_gamma = 1.0 + 0.1 * jax.random.normal(ks[0], (pdim,), jnp.float32)
    gn_beta = 0.1 * jax.random.normal(ks[1], (pdim,), jnp.float32)

    def conv_bn(kw, km, kv, out_c, in_c):
        w = jax.random.normal(kw, (out_c, in_c), jnp.float32) * 0.05
        run_mean = 0.1 * jax.random.normal(km, (out_c,), jnp.float32)
        run_var = jax.random.uniform(kv, (out_c,), jnp.float32, 0.5, 1.5)
        s = 1.0 / jnp.sqrt(run_var + bn_eps)
        return w * s[:, None], -run_mean * s

    w_qkv, b_qkv = conv_bn(ks[2], ks[3], ks[4], qkv_out, pdim)
    w_proj, b_proj = conv_bn(ks[5], ks[6], ks[7], dim, dim)
    return (gn_gamma, gn_beta, w_qkv, b_qkv, w_proj, b_proj)


def prepare_params(params, *, qk_dim, pdim):
    """One-time prep: fold GN affine + attention scale into the qkv conv,
    append the constant-one (denominator) row, fold the proj bias into an extra
    weight column, and pre-cast weights to bf16 (biases stay f32)."""
    gn_gamma, gn_beta, w_qkv, b_qkv, w_proj, b_proj = params
    # 1) GroupNorm affine into the qkv conv:  W(g*xhat+b)+c = (W*g)xhat + (Wb+c)
    w = w_qkv * gn_gamma[None, :]
    b = b_qkv + w_qkv @ gn_beta
    # 2) attention scale into the q rows (softmax is per-query scale-equivariant)
    scale = float(qk_dim) ** (-0.5)
    w = w.at[:qk_dim].multiply(scale)
    b = b.at[:qk_dim].multiply(scale)
    # 3) constant-one output row (zero weights, bias 1.0): [v; 1] @ p then gives
    #    the softmax column sums as its last row on the MXU.
    w = jnp.concatenate([w, jnp.zeros((1, pdim), w.dtype)], axis=0)
    b = jnp.concatenate([b, jnp.ones((1,), b.dtype)], axis=0)
    # 4) proj bias as an extra weight column (operand gets a ones row in-kernel)
    w_proj_aug = jnp.concatenate([w_proj, b_proj[:, None]], axis=1)
    # 5) bf16 weights for single-pass MXU matmuls
    return (w.astype(jnp.bfloat16),
            b.reshape(-1, 1).astype(jnp.float32),
            w_proj_aug.astype(jnp.bfloat16))


def shsa_reference(x_nchw, params, *, qk_dim, pdim):
    """Pure-JAX f32 reference following the PyTorch math (unfolded params)."""
    gn_gamma, gn_beta, w_qkv, b_qkv, w_proj, b_proj = params
    B, C, H, W = x_nchw.shape
    N = H * W
    x = x_nchw.reshape(B, C, N)
    x1, x2 = x[:, :pdim], x[:, pdim:]
    mean = jnp.mean(x1, axis=(1, 2), keepdims=True)
    var = jnp.mean((x1 - mean) ** 2, axis=(1, 2), keepdims=True)
    x1 = (x1 - mean) / jnp.sqrt(var + 1e-5) * gn_gamma[None, :, None] \
        + gn_beta[None, :, None]
    qkv = jnp.einsum('oi,bin->bon', w_qkv, x1) + b_qkv[None, :, None]
    q, k, v = qkv[:, :qk_dim], qkv[:, qk_dim:2 * qk_dim], qkv[:, 2 * qk_dim:]
    attn = jnp.einsum('bdn,bdm->bnm', q, k) * (float(qk_dim) ** -0.5)
    attn = jax.nn.softmax(attn, axis=-1)
    x1o = jnp.einsum('bpm,bnm->bpn', v, attn)
    h = jnp.maximum(jnp.concatenate([x1o, x2], axis=1), 0.0)
    out = jnp.einsum('oc,bcn->bon', w_proj, h) + b_proj[None, :, None]
    return out.reshape(B, C, H, W)


if __name__ == "__main__":
    B, dim, H, W = 2, 32, 16, 16
    qk_dim, pdim = 16, 16

    key = jax.random.PRNGKey(0)
    kx, kp = jax.random.split(key)
    x = jax.random.normal(kx, (B, dim, H, W), jnp.float32)
    params = init_params(kp, dim, qk_dim, pdim)
    prepped = prepare_params(params, qk_dim=qk_dim, pdim=pdim)

    out = shsa_forward(x, prepped, qk_dim=qk_dim, pdim=pdim)
    out = jax.block_until_ready(out)

    ref = shsa_reference(x, params, qk_dim=qk_dim, pdim=pdim)
    assert out.shape == (B, dim, H, W)
    # bf16 matmul operands + bf16 exp + approx reciprocal -> relaxed tolerance.
    max_err = float(jnp.max(jnp.abs(out - ref)))
    assert jnp.allclose(out, ref, atol=2e-2, rtol=2e-2), \
        f"mismatch vs reference (max abs err {max_err:.3e})"

    print("KERNEL_OK")
</pallas_src>

<mosaic_0001>
module attributes {stable_mosaic.version = 11 : i64} {
  func.func @_shsa_kernel(%arg0: i32, %arg1: memref<2x32x256xf32, #tpu.memory_space<vmem>>, %arg2: memref<49x16xbf16, #tpu.memory_space<vmem>>, %arg3: memref<49x1xf32, #tpu.memory_space<vmem>>, %arg4: memref<32x33xbf16, #tpu.memory_space<vmem>>, %arg5: memref<2x32x256xf32, #tpu.memory_space<vmem>>) attributes {dimension_semantics = [#tpu.dimension_semantics<parallel>], iteration_bounds = array<i64: 1>, scalar_prefetch = 0 : i64, scratch_operands = 0 : i64, tpu.core_type = #tpu.core_type<tc>, window_params = [{transform_indices = @transform_0, window_bounds = array<i64: 2, 32, 256>}, {pipeline_mode = #tpu.pipeline_mode<synchronous>, transform_indices = @transform_1, window_bounds = array<i64: 49, 16>}, {pipeline_mode = #tpu.pipeline_mode<synchronous>, transform_indices = @transform_2, window_bounds = array<i64: 49, 1>}, {pipeline_mode = #tpu.pipeline_mode<synchronous>, transform_indices = @transform_3, window_bounds = array<i64: 32, 33>}, {transform_indices = @transform_4, window_bounds = array<i64: 2, 32, 256>}]} {
    %c0 = arith.constant 0 : index
    %c0_0 = arith.constant 0 : index
    %0 = vector.load %arg2[%c0, %c0_0] : memref<49x16xbf16, #tpu.memory_space<vmem>>, vector<49x16xbf16>
    %c0_1 = arith.constant 0 : index
    %c0_2 = arith.constant 0 : index
    %1 = vector.load %arg3[%c0_1, %c0_2] : memref<49x1xf32, #tpu.memory_space<vmem>>, vector<49x1xf32>
    %c0_3 = arith.constant 0 : index
    %c0_4 = arith.constant 0 : index
    %2 = vector.load %arg4[%c0_3, %c0_4] : memref<32x33xbf16, #tpu.memory_space<vmem>>, vector<32x33xbf16>
    %cst = arith.constant 1.000000e+00 : bf16
    %3 = vector.broadcast %cst : bf16 to vector<1x128xbf16>
    %c0_5 = arith.constant 0 : index
    %c0_6 = arith.constant 0 : index
    %c0_7 = arith.constant 0 : index
    %4 = vector.load %arg1[%c0_5, %c0_6, %c0_7] : memref<2x32x256xf32, #tpu.memory_space<vmem>>, vector<1x32x256xf32>
    %5 = vector.shape_cast %4 : vector<1x32x256xf32> to vector<32x256xf32>
    %6 = vector.extract_strided_slice %5 {offsets = [0, 0], sizes = [16, 256], strides = [1, 1]} : vector<32x256xf32> to vector<16x256xf32>
    %7 = vector.extract_strided_slice %5 {offsets = [16, 0], sizes = [16, 256], strides = [1, 1]} : vector<32x256xf32> to vector<16x256xf32>
    %8 = vector.shape_cast %6 : vector<16x256xf32> to vector<1x16x256xf32>
    %cst_8 = arith.constant dense<0.000000e+00> : vector<1xf32>
    %9 = vector.multi_reduction <add>, %8, %cst_8 [1, 2] : vector<1x16x256xf32> to vector<1xf32>
    %10 = vector.shape_cast %9 : vector<1xf32> to vector<1x1x1xf32>
    %11 = vector.extract %10[0, 0, 0] : f32 from vector<1x1x1xf32>
    %cst_9 = arith.constant 4.096000e+03 : f32
    %12 = arith.divf %11, %cst_9 : f32
    %13 = arith.mulf %6, %6 : vector<16x256xf32>
    %14 = vector.shape_cast %13 : vector<16x256xf32> to vector<1x16x256xf32>
    %cst_10 = arith.constant dense<0.000000e+00> : vector<1xf32>
    %15 = vector.multi_reduction <add>, %14, %cst_10 [1, 2] : vector<1x16x256xf32> to vector<1xf32>
    %16 = vector.shape_cast %15 : vector<1xf32> to vector<1x1x1xf32>
    %17 = vector.extract %16[0, 0, 0] : f32 from vector<1x1x1xf32>
    %cst_11 = arith.constant 4.096000e+03 : f32
    %18 = arith.divf %17, %cst_11 : f32
    %19 = arith.mulf %12, %12 : f32
    %20 = arith.subf %18, %19 : f32
    %cst_12 = arith.constant 0.000000e+00 : f32
    %21 = arith.maximumf %20, %cst_12 : f32
    %22 = vector.broadcast %12 : f32 to vector<16x256xf32>
    %23 = arith.subf %6, %22 : vector<16x256xf32>
    %cst_13 = arith.constant 9.99999974E-6 : f32
    %24 = arith.addf %21, %cst_13 : f32
    %25 = math.rsqrt %24 : f32
    %26 = vector.broadcast %25 : f32 to vector<16x256xf32>
    %27 = arith.mulf %23, %26 : vector<16x256xf32>
    %28 = arith.truncf %27 : vector<16x256xf32> to vector<16x256xbf16>
    %cst_14 = arith.constant dense<0.000000e+00> : vector<49x256xf32>
    %29 = tpu.matmul %0, %28, %cst_14 {dimension_numbers = #tpu.dot_dimension_numbers<[1], [0], [0], [1], [0, 0, 1, 1], [], []>} : vector<49x16xbf16>, vector<16x256xbf16>, vector<49x256xf32> -> vector<49x256xf32>
    %30 = vector.broadcast %1 : vector<49x1xf32> to vector<49x256xf32>
    %31 = arith.addf %29, %30 : vector<49x256xf32>
    %32 = vector.extract_strided_slice %31 {offsets = [0, 0], sizes = [16, 256], strides = [1, 1]} : vector<49x256xf32> to vector<16x256xf32>
    %33 = arith.truncf %32 : vector<16x256xf32> to vector<16x256xbf16>
    %34 = vector.extract_strided_slice %31 {offsets = [16, 0], sizes = [16, 256], strides = [1, 1]} : vector<49x256xf32> to vector<16x256xf32>
    %35 = arith.truncf %34 : vector<16x256xf32> to vector<16x256xbf16>
    %36 = vector.extract_strided_slice %31 {offsets = [32, 0], sizes = [17, 256], strides = [1, 1]} : vector<49x256xf32> to vector<17x256xf32>
    %37 = arith.truncf %36 : vector<17x256xf32> to vector<17x256xbf16>
    %cst_15 = arith.constant 0.000000e+00 : f32
    %38 = vector.broadcast %cst_15 : f32 to vector<16x256xf32>
    %39 = arith.maximumf %7, %38 : vector<16x256xf32>
    %40 = arith.truncf %39 : vector<16x256xf32> to vector<16x256xbf16>
    %41 = vector.extract_strided_slice %33 {offsets = [0, 0], sizes = [16, 128], strides = [1, 1]} : vector<16x256xbf16> to vector<16x128xbf16>
    %cst_16 = arith.constant dense<0.000000e+00> : vector<256x128xf32>
    %42 = tpu.matmul %35, %41, %cst_16 {dimension_numbers = #tpu.dot_dimension_numbers<[0], [0], [1], [1], [0, 1, 1, 1], [], []>} : vector<16x256xbf16>, vector<16x128xbf16>, vector<256x128xf32> -> vector<256x128xf32>
    %cst_17 = arith.constant dense<0xFF800000> : vector<128xf32>
    %43 = vector.multi_reduction <maximumf>, %42, %cst_17 [0] : vector<256x128xf32> to vector<128xf32>
    %44 = vector.shape_cast %43 : vector<128xf32> to vector<1x128xf32>
    %45 = vector.broadcast %44 : vector<1x128xf32> to vector<256x128xf32>
    %46 = arith.subf %42, %45 : vector<256x128xf32>
    %47 = arith.truncf %46 : vector<256x128xf32> to vector<256x128xbf16>
    %48 = math.exp %47 : vector<256x128xbf16>
    %cst_18 = arith.constant dense<0.000000e+00> : vector<17x128xf32>
    %49 = tpu.matmul %37, %48, %cst_18 {dimension_numbers = #tpu.dot_dimension_numbers<[1], [0], [0], [1], [0, 0, 1, 1], [], []>} : vector<17x256xbf16>, vector<256x128xbf16>, vector<17x128xf32> -> vector<17x128xf32>
    %50 = vector.extract_strided_slice %49 {offsets = [16, 0], sizes = [1, 128], strides = [1, 1]} : vector<17x128xf32> to vector<1x128xf32>
    %51 = tpu.reciprocal %50 {approx = true} : vector<1x128xf32> -> vector<1x128xf32>
    %52 = vector.extract_strided_slice %49 {offsets = [0, 0], sizes = [16, 128], strides = [1, 1]} : vector<17x128xf32> to vector<16x128xf32>
    %53 = vector.broadcast %51 : vector<1x128xf32> to vector<16x128xf32>
    %54 = arith.mulf %52, %53 : vector<16x128xf32>
    %cst_19 = arith.constant 0.000000e+00 : f32
    %55 = vector.broadcast %cst_19 : f32 to vector<16x128xf32>
    %56 = arith.maximumf %54, %55 : vector<16x128xf32>
    %57 = arith.truncf %56 : vector<16x128xf32> to vector<16x128xbf16>
    %58 = vector.extract_strided_slice %40 {offsets = [0, 0], sizes = [16, 128], strides = [1, 1]} : vector<16x256xbf16> to vector<16x128xbf16>
    %59 = tpu.concatenate %57, %58, %3 in 0 : vector<16x128xbf16>, vector<16x128xbf16>, vector<1x128xbf16> -> vector<33x128xbf16>
    %cst_20 = arith.constant dense<0.000000e+00> : vector<32x128xf32>
    %60 = tpu.matmul %2, %59, %cst_20 {dimension_numbers = #tpu.dot_dimension_numbers<[1], [0], [0], [1], [0, 0, 1, 1], [], []>} : vector<32x33xbf16>, vector<33x128xbf16>, vector<32x128xf32> -> vector<32x128xf32>
    %c0_21 = arith.constant 0 : index
    %c0_22 = arith.constant 0 : index
    %c0_23 = arith.constant 0 : index
    %61 = vector.load %arg5[%c0_21, %c0_22, %c0_23] : memref<2x32x256xf32, #tpu.memory_space<vmem>>, vector<1x32x128xf32>
    %62 = vector.shape_cast %61 : vector<1x32x128xf32> to vector<32x128xf32>
    %63 = vector.shape_cast %60 : vector<32x128xf32> to vector<1x32x128xf32>
    tpu.vector_store %arg5[%c0_21, %c0_22, %c0_23], %63 {strides = array<i32>} : memref<2x32x256xf32, #tpu.memory_space<vmem>>, vector<1x32x128xf32>,
    %64 = vector.extract_strided_slice %33 {offsets = [0, 128], sizes = [16, 128], strides = [1, 1]} : vector<16x256xbf16> to vector<16x128xbf16>
    %cst_24 = arith.constant dense<0.000000e+00> : vector<256x128xf32>
    %65 = tpu.matmul %35, %64, %cst_24 {dimension_numbers = #tpu.dot_dimension_numbers<[0], [0], [1], [1], [0, 1, 1, 1], [], []>} : vector<16x256xbf16>, vector<16x128xbf16>, vector<256x128xf32> -> vector<256x128xf32>
    %cst_25 = arith.constant dense<0xFF800000> : vector<128xf32>
    %66 = vector.multi_reduction <maximumf>, %65, %cst_25 [0] : vector<256x128xf32> to vector<128xf32>
    %67 = vector.shape_cast %66 : vector<128xf32> to vector<1x128xf32>
    %68 = vector.broadcast %67 : vector<1x128xf32> to vector<256x128xf32>
    %69 = arith.subf %65, %68 : vector<256x128xf32>
    %70 = arith.truncf %69 : vector<256x128xf32> to vector<256x128xbf16>
    %71 = math.exp %70 : vector<256x128xbf16>
    %cst_26 = arith.constant dense<0.000000e+00> : vector<17x128xf32>
    %72 = tpu.matmul %37, %71, %cst_26 {dimension_numbers = #tpu.dot_dimension_numbers<[1], [0], [0], [1], [0, 0, 1, 1], [], []>} : vector<17x256xbf16>, vector<256x128xbf16>, vector<17x128xf32> -> vector<17x128xf32>
    %73 = vector.extract_strided_slice %72 {offsets = [16, 0], sizes = [1, 128], strides = [1, 1]} : vector<17x128xf32> to vector<1x128xf32>
    %74 = tpu.reciprocal %73 {approx = true} : vector<1x128xf32> -> vector<1x128xf32>
    %75 = vector.extract_strided_slice %72 {offsets = [0, 0], sizes = [16, 128], strides = [1, 1]} : vector<17x128xf32> to vector<16x128xf32>
    %76 = vector.broadcast %74 : vector<1x128xf32> to vector<16x128xf32>
    %77 = arith.mulf %75, %76 : vector<16x128xf32>
    %cst_27 = arith.constant 0.000000e+00 : f32
    %78 = vector.broadcast %cst_27 : f32 to vector<16x128xf32>
    %79 = arith.maximumf %77, %78 : vector<16x128xf32>
    %80 = arith.truncf %79 : vector<16x128xf32> to vector<16x128xbf16>
    %81 = vector.extract_strided_slice %40 {offsets = [0, 128], sizes = [16, 128], strides = [1, 1]} : vector<16x256xbf16> to vector<16x128xbf16>
    %82 = tpu.concatenate %80, %81, %3 in 0 : vector<16x128xbf16>, vector<16x128xbf16>, vector<1x128xbf16> -> vector<33x128xbf16>
    %cst_28 = arith.constant dense<0.000000e+00> : vector<32x128xf32>
    %83 = tpu.matmul %2, %82, %cst_28 {dimension_numbers = #tpu.dot_dimension_numbers<[1], [0], [0], [1], [0, 0, 1, 1], [], []>} : vector<32x33xbf16>, vector<33x128xbf16>, vector<32x128xf32> -> vector<32x128xf32>
    %c0_29 = arith.constant 0 : index
    %c0_30 = arith.constant 0 : index
    %c128 = arith.constant 128 : index
    %84 = vector.load %arg5[%c0_29, %c0_30, %c128] : memref<2x32x256xf32, #tpu.memory_space<vmem>>, vector<1x32x128xf32>
    %85 = vector.shape_cast %84 : vector<1x32x128xf32> to vector<32x128xf32>
    %86 = vector.shape_cast %83 : vector<32x128xf32> to vector<1x32x128xf32>
    tpu.vector_store %arg5[%c0_29, %c0_30, %c128], %86 {strides = array<i32>} : memref<2x32x256xf32, #tpu.memory_space<vmem>>, vector<1x32x128xf32>,
    %c1 = arith.constant 1 : index
    %c0_31 = arith.constant 0 : index
    %c0_32 = arith.constant 0 : index
    %87 = vector.load %arg1[%c1, %c0_31, %c0_32] : memref<2x32x256xf32, #tpu.memory_space<vmem>>, vector<1x32x256xf32>
    %88 = vector.shape_cast %87 : vector<1x32x256xf32> to vector<32x256xf32>
    %89 = vector.extract_strided_slice %88 {offsets = [0, 0], sizes = [16, 256], strides = [1, 1]} : vector<32x256xf32> to vector<16x256xf32>
    %90 = vector.extract_strided_slice %88 {offsets = [16, 0], sizes = [16, 256], strides = [1, 1]} : vector<32x256xf32> to vector<16x256xf32>
    %91 = vector.shape_cast %89 : vector<16x256xf32> to vector<1x16x256xf32>
    %cst_33 = arith.constant dense<0.000000e+00> : vector<1xf32>
    %92 = vector.multi_reduction <add>, %91, %cst_33 [1, 2] : vector<1x16x256xf32> to vector<1xf32>
    %93 = vector.shape_cast %92 : vector<1xf32> to vector<1x1x1xf32>
    %94 = vector.extract %93[0, 0, 0] : f32 from vector<1x1x1xf32>
    %cst_34 = arith.constant 4.096000e+03 : f32
    %95 = arith.divf %94, %cst_34 : f32
    %96 = arith.mulf %89, %89 : vector<16x256xf32>
    %97 = vector.shape_cast %96 : vector<16x256xf32> to vector<1x16x256xf32>
    %cst_35 = arith.constant dense<0.000000e+00> : vector<1xf32>
    %98 = vector.multi_reduction <add>, %97, %cst_35 [1, 2] : vector<1x16x256xf32> to vector<1xf32>
    %99 = vector.shape_cast %98 : vector<1xf32> to vector<1x1x1xf32>
    %100 = vector.extract %99[0, 0, 0] : f32 from vector<1x1x1xf32>
    %cst_36 = arith.constant 4.096000e+03 : f32
    %101 = arith.divf %100, %cst_36 : f32
    %102 = arith.mulf %95, %95 : f32
    %103 = arith.subf %101, %102 : f32
    %cst_37 = arith.constant 0.000000e+00 : f32
    %104 = arith.maximumf %103, %cst_37 : f32
    %105 = vector.broadcast %95 : f32 to vector<16x256xf32>
    %106 = arith.subf %89, %105 : vector<16x256xf32>
    %cst_38 = arith.constant 9.99999974E-6 : f32
    %107 = arith.addf %104, %cst_38 : f32
    %108 = math.rsqrt %107 : f32
    %109 = vector.broadcast %108 : f32 to vector<16x256xf32>
    %110 = arith.mulf %106, %109 : vector<16x256xf32>
    %111 = arith.truncf %110 : vector<16x256xf32> to vector<16x256xbf16>
    %cst_39 = arith.constant dense<0.000000e+00> : vector<49x256xf32>
    %112 = tpu.matmul %0, %111, %cst_39 {dimension_numbers = #tpu.dot_dimension_numbers<[1], [0], [0], [1], [0, 0, 1, 1], [], []>} : vector<49x16xbf16>, vector<16x256xbf16>, vector<49x256xf32> -> vector<49x256xf32>
    %113 = vector.broadcast %1 : vector<49x1xf32> to vector<49x256xf32>
    %114 = arith.addf %112, %113 : vector<49x256xf32>
    %115 = vector.extract_strided_slice %114 {offsets = [0, 0], sizes = [16, 256], strides = [1, 1]} : vector<49x256xf32> to vector<16x256xf32>
    %116 = arith.truncf %115 : vector<16x256xf32> to vector<16x256xbf16>
    %117 = vector.extract_strided_slice %114 {offsets = [16, 0], sizes = [16, 256], strides = [1, 1]} : vector<49x256xf32> to vector<16x256xf32>
    %118 = arith.truncf %117 : vector<16x256xf32> to vector<16x256xbf16>
    %119 = vector.extract_strided_slice %114 {offsets = [32, 0], sizes = [17, 256], strides = [1, 1]} : vector<49x256xf32> to vector<17x256xf32>
    %120 = arith.truncf %119 : vector<17x256xf32> to vector<17x256xbf16>
    %cst_40 = arith.constant 0.000000e+00 : f32
    %121 = vector.broadcast %cst_40 : f32 to vector<16x256xf32>
    %122 = arith.maximumf %90, %121 : vector<16x256xf32>
    %123 = arith.truncf %122 : vector<16x256xf32> to vector<16x256xbf16>
    %124 = vector.extract_strided_slice %116 {offsets = [0, 0], sizes = [16, 128], strides = [1, 1]} : vector<16x256xbf16> to vector<16x128xbf16>
    %cst_41 = arith.constant dense<0.000000e+00> : vector<256x128xf32>
    %125 = tpu.matmul %118, %124, %cst_41 {dimension_numbers = #tpu.dot_dimension_numbers<[0], [0], [1], [1], [0, 1, 1, 1], [], []>} : vector<16x256xbf16>, vector<16x128xbf16>, vector<256x128xf32> -> vector<256x128xf32>
    %cst_42 = arith.constant dense<0xFF800000> : vector<128xf32>
    %126 = vector.multi_reduction <maximumf>, %125, %cst_42 [0] : vector<256x128xf32> to vector<128xf32>
    %127 = vector.shape_cast %126 : vector<128xf32> to vector<1x128xf32>
    %128 = vector.broadcast %127 : vector<1x128xf32> to vector<256x128xf32>
    %129 = arith.subf %125, %128 : vector<256x128xf32>
    %130 = arith.truncf %129 : vector<256x128xf32> to vector<256x128xbf16>
    %131 = math.exp %130 : vector<256x128xbf16>
    %cst_43 = arith.constant dense<0.000000e+00> : vector<17x128xf32>
    %132 = tpu.matmul %120, %131, %cst_43 {dimension_numbers = #tpu.dot_dimension_numbers<[1], [0], [0], [1], [0, 0, 1, 1], [], []>} : vector<17x256xbf16>, vector<256x128xbf16>, vector<17x128xf32> -> vector<17x128xf32>
    %133 = vector.extract_strided_slice %132 {offsets = [16, 0], sizes = [1, 128], strides = [1, 1]} : vector<17x128xf32> to vector<1x128xf32>
    %134 = tpu.reciprocal %133 {approx = true} : vector<1x128xf32> -> vector<1x128xf32>
    %135 = vector.extract_strided_slice %132 {offsets = [0, 0], sizes = [16, 128], strides = [1, 1]} : vector<17x128xf32> to vector<16x128xf32>
    %136 = vector.broadcast %134 : vector<1x128xf32> to vector<16x128xf32>
    %137 = arith.mulf %135, %136 : vector<16x128xf32>
    %cst_44 = arith.constant 0.000000e+00 : f32
    %138 = vector.broadcast %cst_44 : f32 to vector<16x128xf32>
    %139 = arith.maximumf %137, %138 : vector<16x128xf32>
    %140 = arith.truncf %139 : vector<16x128xf32> to vector<16x128xbf16>
    %141 = vector.extract_strided_slice %123 {offsets = [0, 0], sizes = [16, 128], strides = [1, 1]} : vector<16x256xbf16> to vector<16x128xbf16>
    %142 = tpu.concatenate %140, %141, %3 in 0 : vector<16x128xbf16>, vector<16x128xbf16>, vector<1x128xbf16> -> vector<33x128xbf16>
    %cst_45 = arith.constant dense<0.000000e+00> : vector<32x128xf32>
    %143 = tpu.matmul %2, %142, %cst_45 {dimension_numbers = #tpu.dot_dimension_numbers<[1], [0], [0], [1], [0, 0, 1, 1], [], []>} : vector<32x33xbf16>, vector<33x128xbf16>, vector<32x128xf32> -> vector<32x128xf32>
    %c1_46 = arith.constant 1 : index
    %c0_47 = arith.constant 0 : index
    %c0_48 = arith.constant 0 : index
    %144 = vector.load %arg5[%c1_46, %c0_47, %c0_48] : memref<2x32x256xf32, #tpu.memory_space<vmem>>, vector<1x32x128xf32>
    %145 = vector.shape_cast %144 : vector<1x32x128xf32> to vector<32x128xf32>
    %146 = vector.shape_cast %143 : vector<32x128xf32> to vector<1x32x128xf32>
    tpu.vector_store %arg5[%c1_46, %c0_47, %c0_48], %146 {strides = array<i32>} : memref<2x32x256xf32, #tpu.memory_space<vmem>>, vector<1x32x128xf32>,
    %147 = vector.extract_strided_slice %116 {offsets = [0, 128], sizes = [16, 128], strides = [1, 1]} : vector<16x256xbf16> to vector<16x128xbf16>
    %cst_49 = arith.constant dense<0.000000e+00> : vector<256x128xf32>
    %148 = tpu.matmul %118, %147, %cst_49 {dimension_numbers = #tpu.dot_dimension_numbers<[0], [0], [1], [1], [0, 1, 1, 1], [], []>} : vector<16x256xbf16>, vector<16x128xbf16>, vector<256x128xf32> -> vector<256x128xf32>
    %cst_50 = arith.constant dense<0xFF800000> : vector<128xf32>
    %149 = vector.multi_reduction <maximumf>, %148, %cst_50 [0] : vector<256x128xf32> to vector<128xf32>
    %150 = vector.shape_cast %149 : vector<128xf32> to vector<1x128xf32>
    %151 = vector.broadcast %150 : vector<1x128xf32> to vector<256x128xf32>
    %152 = arith.subf %148, %151 : vector<256x128xf32>
    %153 = arith.truncf %152 : vector<256x128xf32> to vector<256x128xbf16>
    %154 = math.exp %153 : vector<256x128xbf16>
    %cst_51 = arith.constant dense<0.000000e+00> : vector<17x128xf32>
    %155 = tpu.matmul %120, %154, %cst_51 {dimension_numbers = #tpu.dot_dimension_numbers<[1], [0], [0], [1], [0, 0, 1, 1], [], []>} : vector<17x256xbf16>, vector<256x128xbf16>, vector<17x128xf32> -> vector<17x128xf32>
    %156 = vector.extract_strided_slice %155 {offsets = [16, 0], sizes = [1, 128], strides = [1, 1]} : vector<17x128xf32> to vector<1x128xf32>
    %157 = tpu.reciprocal %156 {approx = true} : vector<1x128xf32> -> vector<1x128xf32>
    %158 = vector.extract_strided_slice %155 {offsets = [0, 0], sizes = [16, 128], strides = [1, 1]} : vector<17x128xf32> to vector<16x128xf32>
    %159 = vector.broadcast %157 : vector<1x128xf32> to vector<16x128xf32>
    %160 = arith.mulf %158, %159 : vector<16x128xf32>
    %cst_52 = arith.constant 0.000000e+00 : f32
    %161 = vector.broadcast %cst_52 : f32 to vector<16x128xf32>
    %162 = arith.maximumf %160, %161 : vector<16x128xf32>
    %163 = arith.truncf %162 : vector<16x128xf32> to vector<16x128xbf16>
    %164 = vector.extract_strided_slice %123 {offsets = [0, 128], sizes = [16, 128], strides = [1, 1]} : vector<16x256xbf16> to vector<16x128xbf16>
    %165 = tpu.concatenate %163, %164, %3 in 0 : vector<16x128xbf16>, vector<16x128xbf16>, vector<1x128xbf16> -> vector<33x128xbf16>
    %cst_53 = arith.constant dense<0.000000e+00> : vector<32x128xf32>
    %166 = tpu.matmul %2, %165, %cst_53 {dimension_numbers = #tpu.dot_dimension_numbers<[1], [0], [0], [1], [0, 0, 1, 1], [], []>} : vector<32x33xbf16>, vector<33x128xbf16>, vector<32x128xf32> -> vector<32x128xf32>
    %c1_54 = arith.constant 1 : index
    %c0_55 = arith.constant 0 : index
    %c128_56 = arith.constant 128 : index
    %167 = vector.load %arg5[%c1_54, %c0_55, %c128_56] : memref<2x32x256xf32, #tpu.memory_space<vmem>>, vector<1x32x128xf32>
    %168 = vector.shape_cast %167 : vector<1x32x128xf32> to vector<32x128xf32>
    %169 = vector.shape_cast %166 : vector<32x128xf32> to vector<1x32x128xf32>
    tpu.vector_store %arg5[%c1_54, %c0_55, %c128_56], %169 {strides = array<i32>} : memref<2x32x256xf32, #tpu.memory_space<vmem>>, vector<1x32x128xf32>,
    return
  }
  func.func @transform_0(%arg0: i32) -> (i32, i32, i32) {
    %c0_i32 = arith.constant 0 : i32
    %c0_i32_0 = arith.constant 0 : i32
    %c0_i32_1 = arith.constant 0 : i32
    return %arg0, %c0_i32, %c0_i32_0 : i32, i32, i32
  }
  func.func @transform_1(%arg0: i32) -> (i32, i32) {
    %c0_i32 = arith.constant 0 : i32
    %c0_i32_0 = arith.constant 0 : i32
    %c0_i32_1 = arith.constant 0 : i32
    return %c0_i32, %c0_i32_0 : i32, i32
  }
  func.func @transform_2(%arg0: i32) -> (i32, i32) {
    %c0_i32 = arith.constant 0 : i32
    %c0_i32_0 = arith.constant 0 : i32
    %c0_i32_1 = arith.constant 0 : i32
    return %c0_i32, %c0_i32_0 : i32, i32
  }
  func.func @transform_3(%arg0: i32) -> (i32, i32) {
    %c0_i32 = arith.constant 0 : i32
    %c0_i32_0 = arith.constant 0 : i32
    %c0_i32_1 = arith.constant 0 : i32
    return %c0_i32, %c0_i32_0 : i32, i32
  }
  func.func @transform_4(%arg0: i32) -> (i32, i32, i32) {
    %c0_i32 = arith.constant 0 : i32
    %c0_i32_0 = arith.constant 0 : i32
    %c0_i32_1 = arith.constant 0 : i32
    return %arg0, %c0_i32, %c0_i32_0 : i32, i32, i32
  }
}

</mosaic_0001>

<llo_original>
// kernel: tpu_custom_call.1
$region0: #{tpu_custom_call.1}
  #allocation0 [shape = 'u32[]', space=smem, size = 0x4, offset = 0x4, fixed_abs, tag = 'smem constant byte address 0x4 - core index']
  #allocation1 [shape = 'u32[72,128]{1,0:T(1,128)}', space=vmem, size = 0x9000, scoped, tag = 'internal scratch']
  %s0 = inlined_call_operand.hbm [shape: f32[2,32,256], index: 0, kind: input, shape index: {}]
  %s1 = inlined_call_operand.vmem [shape: bf16[49,16], index: 1, kind: input, shape index: {}]
  %s2 = inlined_call_operand.vmem [shape: f32[49,1], index: 2, kind: input, shape index: {}]
  %s3 = inlined_call_operand.vmem [shape: bf16[32,33], index: 3, kind: input, shape index: {}]
  %s4 = inlined_call_operand.hbm [shape: f32[2,32,256], index: 4, kind: output, shape index: {}]
  %s5 = sld [smem:[#allocation0]]
  $region30: #{tpu_custom_call.1} parent=0
    _
  %s7 = ssub.s32 1, %s5
  %s8 = scalar_select 0, %s7, %s5
  $region1: #{tpu_custom_call.1} parent=0
    #allocation2 [shape = 'u8[65536]{0}', space=vmem, size = 0x10000, scoped, tag = 'input window, operand 0, single buffered']
    #allocation3 [shape = 's32[1]{0}', space=sflag, size = 0x4, scoped, tag = 'scoped memory for tpu_custom_call.1']
    #allocation4 [shape = 's32[1]{0}', space=sflag, size = 0x4, scoped, tag = 'scoped memory for tpu_custom_call.1']
    #allocation5 [shape = 'u8[65536]{0}', space=vmem, size = 0x10000, scoped, tag = 'output window, operand 0, single buffered']
    %9 = vsyncpa [#allocation3], 0
    %10 = vsyncpa [#allocation4], 0
    // Predicated region
    $region2: #{tpu_custom_call.1} parent=1 // pred_check
      _
    $region3: #{tpu_custom_call.1} parent=1 // pred_check_branch
      %12 = sbr.rel (0) target = $region5
    $region4: #{tpu_custom_call.1} parent=1 // pred_region
      %14 = vsyncadd [#allocation3], 0
      %s15 = sshll.u32 %s0, 4
      %s16 = int_to_ptr.hbm [resolvable:$true] %s15
      %s17 = sshll.u32 [#allocation2], 4
      %s18 = int_to_ptr.vmem [resolvable:$true] %s17
      %23 = dma.hbm_to_vmem [thread:$0]  %s16, 2048, %s18, [#allocation3], 256, 256, 16
    $region5: #{tpu_custom_call.1} parent=1 // pred_fallthru
      _
    // Predicated region
    $region6: #{tpu_custom_call.1} parent=1 // pred_check
      _
    $region7: #{tpu_custom_call.1} parent=1 // pred_check_branch
      %25 = sbr.rel (0) target = $region9
    $region8: #{tpu_custom_call.1} parent=1 // pred_region
      _
    $region9: #{tpu_custom_call.1} parent=1 // pred_fallthru
      _
    // Predicated region
    $region10: #{tpu_custom_call.1} parent=1 // pred_check
      _
    $region11: #{tpu_custom_call.1} parent=1 // pred_check_branch
      %27 = sbr.rel (0) target = $region13
    $region12: #{tpu_custom_call.1} parent=1 // pred_region
      _
    $region13: #{tpu_custom_call.1} parent=1 // pred_fallthru
      _
    // Predicated region
    $region14: #{tpu_custom_call.1} parent=1 // pred_check
      _
    $region15: #{tpu_custom_call.1} parent=1 // pred_check_branch
      %29 = sbr.rel (0) target = $region17
    $region16: #{tpu_custom_call.1} parent=1 // pred_region
      _
    $region17: #{tpu_custom_call.1} parent=1 // pred_fallthru
      _
    // Predicated region
    $region18: #{tpu_custom_call.1} parent=1 // pred_check
      _
    $region19: #{tpu_custom_call.1} parent=1 // pred_check_branch
      %31 = sbr.rel (0) target = $region21
    $region20: #{tpu_custom_call.1} parent=1 // pred_region
      %33 = dma.done [#allocation3], 2048
    $region21: #{tpu_custom_call.1} parent=1 // pred_fallthru
      _
    %v36 = vld [vmem:[%s1] sm:$0xf]
    %v37 = vld [vmem:[%s1 + $0x4] sm:$0xf]
    %v38 = vld [vmem:[%s1 + $0x8] sm:$0xf]
    %v39 = vld [vmem:[%s1 + $0xc] sm:$0xf]
    %v40 = vld [vmem:[%s1 + $0x10] sm:$0xf]
    %v41 = vld [vmem:[%s1 + $0x14] sm:$0xf]
    %v42 = vld [vmem:[%s1 + $0x18] sm:$0x1]
    %v43 = vld [vmem:[%s2] sm:$0xff]
    %v44 = vld [vmem:[%s2 + $0x8] sm:$0xff]
    %v45 = vld [vmem:[%s2 + $0x10] sm:$0xff]
    %v46 = vld [vmem:[%s2 + $0x18] sm:$0xff]
    %v47 = vld [vmem:[%s2 + $0x20] sm:$0xff]
    %v48 = vld [vmem:[%s2 + $0x28] sm:$0xff]
    %v49 = vld [vmem:[%s2 + $0x30] sm:$0x1]
    %v50 = vld [vmem:[%s3] sm:$0xf]
    %v51 = vld [vmem:[%s3 + $0x4] sm:$0xf]
    %v52 = vld [vmem:[%s3 + $0x8] sm:$0xf]
    %v53 = vld [vmem:[%s3 + $0xc] sm:$0xf]
    %v54 = vld [vmem:[#allocation2] sm:$0xff]
    %v55 = vld [vmem:[#allocation2 + $0x8] sm:$0xff]
    %v56 = vld [vmem:[#allocation2 + $0x10] sm:$0xff]
    %v57 = vld [vmem:[#allocation2 + $0x18] sm:$0xff]
    %v58 = vld [vmem:[#allocation2 + $0x20] sm:$0xff]
    %v59 = vld [vmem:[#allocation2 + $0x28] sm:$0xff]
    %v60 = vld [vmem:[#allocation2 + $0x30] sm:$0xff]
    %v61 = vld [vmem:[#allocation2 + $0x38] sm:$0xff]
    %v62 = vadd.f32 %v54, %v55
    %v63 = vadd.f32 %v62, %v56
    %v64 = vadd.f32 %v63, %v57
    %65 = vadd.xlane.f32.xlu0 %v64
    %v66 = vpop.xlane.xlu0 %65
    %v67 = vrot.slane %v66, 4
    %v68 = vadd.f32 %v66, %v67
    %v69 = vrot.slane %v68, 2
    %v70 = vadd.f32 %v68, %v69
    %v71 = vrot.slane %v70, 1
    %v72 = vadd.f32 %v70, %v71
    %s73 = vtos %v72
    %v74 = vrcp.pop 4096.0
    %v75 = vmul.f32 4096.0, %v74
    %v76 = vsub.f32 1.0, %v75
    %v77 = vmul.f32 %v74, %v76
    %v78 = vadd.f32 %v74, %v77
    %vm79 = vweird.f32 %v74
    %v80 = vsel %vm79, %v74, %v78
    %s81 = vtos %v80
    %s82 = smul.f32 %s73, %s81
    %v83 = vmul.f32 %v54, %v54
    %v84 = vmul.f32 %v55, %v55
    %v85 = vmul.f32 %v56, %v56
    %v86 = vmul.f32 %v57, %v57
    %v87 = vadd.f32 %v83, %v84
    %v88 = vadd.f32 %v87, %v85
    %v89 = vadd.f32 %v88, %v86
    %90 = vadd.xlane.f32.xlu0 %v89
    %v91 = vpop.xlane.xlu0 %90
    %v92 = vrot.slane %v91, 4
    %v93 = vadd.f32 %v91, %v92
    %v94 = vrot.slane %v93, 2
    %v95 = vadd.f32 %v93, %v94
    %v96 = vrot.slane %v95, 1
    %v97 = vadd.f32 %v95, %v96
    %s98 = vtos %v97
    %v99 = vrcp.pop 4096.0
    %v100 = vmul.f32 4096.0, %v99
    %v101 = vsub.f32 1.0, %v100
    %v102 = vmul.f32 %v99, %v101
    %v103 = vadd.f32 %v99, %v102
    %vm104 = vweird.f32 %v99
    %v105 = vsel %vm104, %v99, %v103
    %s106 = vtos %v105
    %s107 = smul.f32 %s98, %s106
    %s108 = smul.f32 %s82, %s82
    %s109 = ssub.f32 %s107, %s108
    %s110 = smax.f32 %s109, 0.0
    %v111 = vstv %s82
    %v112 = vsub.f32 %v54, %v111
    %v113 = vsub.f32 %v55, %v111
    %v114 = vsub.f32 %v56, %v111
    %v115 = vsub.f32 %v57, %v111
    %s116 = sadd.f32 %s110, 1e-05
    %v117 = vstv %s116
    %v118 = vrsqrt.pop %v117
    %v119 = vmul.f32 %v118, %v117
    %v120 = vmul.f32 %v119, %v118
    %v121 = vmul.f32 0.5, %v120
    %v122 = vsub.f32 1.5, %v121
    %v123 = vmul.f32 %v118, %v122
    %vm124 = vweird.f32 %v117
    %vm125 = vweird.f32 %v118
    %vm126 = vmor %vm124, %vm125
    %v127 = vsel %vm126, %v118, %v123
    %s128 = vtos %v127
    %v129 = vstv %s128
    %v130 = vmul.f32 %v112, %v129
    %v131 = vmul.f32 %v113, %v129
    %v132 = vmul.f32 %v114, %v129
    %v133 = vmul.f32 %v115, %v129
    %v134 = vpack.c.bf16 %v132, %v130
    %v135 = vpack.c.bf16 %v133, %v131
    %137 = vset.pattern.permute.xlu0 0
    %138 = vperm.xlu0 %137, %v43
    %v139 = vpop.permute.xlu0 %138
    %142 = vset.pattern.permute.xlu0 0
    %143 = vperm.xlu0 %142, %v44
    %v144 = vpop.permute.xlu0 %143
    %147 = vset.pattern.permute.xlu0 0
    %148 = vperm.xlu0 %147, %v45
    %v149 = vpop.permute.xlu0 %148
    %152 = vset.pattern.permute.xlu0 0
    %153 = vperm.xlu0 %152, %v46
    %v154 = vpop.permute.xlu0 %153
    %157 = vset.pattern.permute.xlu0 0
    %158 = vperm.xlu0 %157, %v47
    %v159 = vpop.permute.xlu0 %158
    %162 = vset.pattern.permute.xlu0 0
    %163 = vperm.xlu0 %162, %v48
    %v164 = vpop.permute.xlu0 %163
    %167 = vset.pattern.permute.xlu0 0
    %168 = vperm.xlu0 %167, %v49
    %v169 = vpop.permute.xlu0 %168
    %v178 = vunpack.c.l.b16 %v36
    %v179 = vunpack.c.l.b16 %v37
    %v180 = vunpack.c.l.b16 %v38
    %v181 = vunpack.c.l.b16 %v39
    %v182 = vunpack.c.l.b16 %v40
    %v183 = vunpack.c.l.b16 %v41
    %v184 = vunpack.c.l.b16 %v42
    %v185 = vpack.c.b16 %v179, %v178
    %v186 = vpack.c.b16 %v181, %v180
    %v187 = vpack.c.b16 %v183, %v182
    %v188 = vpack.c.b16 %v184, %v184
    %vm189 = vcmask 130048
    %v191 = vsel %vm189, %v185, 0
    %v194 = vsel %vm189, %v186, 0
    %v197 = vsel %vm189, %v187, 0
    %v200 = vsel %vm189, %v188, 0
    %202 = vmatpush.bf16.msra.mxu0 0
    %203 = vmatpush.bf16.msra.mxu0 0
    %204 = vmatpush.bf16.msra.mxu0 0
    %205 = vmatpush.bf16.msra.mxu0 0
    %206 = vmatpush.bf16.msra.mxu0 0
    %207 = vmatpush.bf16.msra.mxu0 0
    %208 = vmatpush.bf16.msra.mxu0 0
    %209 = vmatpush.bf16.msra.mxu0 %v134
    %210 = vmatmul.bf16.gmra.mxu0 %v191
    %v211 = vpop.f32.mrf.mxu0
    %v212 = vadd.f32 %v139, %v211
    %v213 = vpop.f32.mrf.mxu0
    %v214 = vadd.f32 %v144, %v213
    %215 = vmatmul.bf16.gmra.mxu0 %v194
    %v216 = vpop.f32.mrf.mxu0
    %v217 = vadd.f32 %v149, %v216
    %v218 = vpop.f32.mrf.mxu0
    %v219 = vadd.f32 %v154, %v218
    %220 = vmatmul.bf16.gmra.mxu0 %v197
    %v221 = vpop.f32.mrf.mxu0
    %v222 = vadd.f32 %v159, %v221
    %v223 = vpop.f32.mrf.mxu0
    %v224 = vadd.f32 %v164, %v223
    %225 = vmatmul.bf16.gmra.mxu0 %v200
    %v226 = vpop.f32.mrf.mxu0
    %v227 = vadd.f32 %v169, %v226
    %v228 = vpop.f32.mrf.mxu0
    %229 = vdwg.mxu0
    %230 = vmatpush.bf16.msra.mxu0 0
    %231 = vmatpush.bf16.msra.mxu0 0
    %232 = vmatpush.bf16.msra.mxu0 0
    %233 = vmatpush.bf16.msra.mxu0 0
    %234 = vmatpush.bf16.msra.mxu0 0
    %235 = vmatpush.bf16.msra.mxu0 0
    %236 = vmatpush.bf16.msra.mxu0 0
    %237 = vmatpush.bf16.msra.mxu0 %v135
    %238 = vmatmul.bf16.gmra.mxu0 %v191
    %v239 = vpop.f32.mrf.mxu0
    %v240 = vadd.f32 %v139, %v239
    %v241 = vpop.f32.mrf.mxu0
    %v242 = vadd.f32 %v144, %v241
    %243 = vmatmul.bf16.gmra.mxu0 %v194
    %v244 = vpop.f32.mrf.mxu0
    %v245 = vadd.f32 %v149, %v244
    %v246 = vpop.f32.mrf.mxu0
    %v247 = vadd.f32 %v154, %v246
    %248 = vmatmul.bf16.gmra.mxu0 %v197
    %v249 = vpop.f32.mrf.mxu0
    %v250 = vadd.f32 %v159, %v249
    %v251 = vpop.f32.mrf.mxu0
    %v252 = vadd.f32 %v164, %v251
    %253 = vmatmul.bf16.gmra.mxu0 %v200
    %v254 = vpop.f32.mrf.mxu0
    %v255 = vadd.f32 %v169, %v254
    %v256 = vpop.f32.mrf.mxu0
    %257 = vdwg.mxu0
    %v258 = vpack.c.bf16 %v240, %v212
    %v259 = vpack.c.bf16 %v242, %v214
    %v260 = vpack.c.bf16 %v219, %v217
    %v261 = vpack.c.bf16 %v247, %v245
    %v262 = vpack.c.bf16 %v224, %v222
    %v263 = vpack.c.bf16 %v252, %v250
    %v264 = vpack.c.bf16 %v227, %v227
    %v265 = vpack.c.bf16 %v255, %v255
    %v266 = vmax.f32 %v58, 0.0
    %v267 = vmax.f32 %v59, 0.0
    %v268 = vmax.f32 %v60, 0.0
    %v269 = vmax.f32 %v61, 0.0
    %v270 = vpack.c.bf16 %v267, %v266
    %v271 = vpack.c.bf16 %v269, %v268
    %272 = vxpose.binary.xlu0.c.b16.start [1/16] %v261, %v260, 128
    %273 = vxpose.binary.xlu0.c.b16.cont [2/16] 0, 0, 128
    %274 = vxpose.binary.xlu0.c.b16.cont [3/16] 0, 0, 128
    %275 = vxpose.binary.xlu0.c.b16.cont [4/16] 0, 0, 128
    %276 = vxpose.binary.xlu0.c.b16.cont [5/16] 0, 0, 128
    %277 = vxpose.binary.xlu0.c.b16.cont [6/16] 0, 0, 128
    %278 = vxpose.binary.xlu0.c.b16.cont [7/16] 0, 0, 128
    %279 = vxpose.binary.xlu0.c.b16.end [8/16] 0, 0, 128
    %v280 = vpop.trf.xlu0
    %v281 = vpop.trf.xlu0
    %v282 = vpop.trf.xlu0
    %v283 = vpop.trf.xlu0
    %v284 = vpop.trf.xlu0
    %v285 = vpop.trf.xlu0
    %v286 = vpop.trf.xlu0
    %v287 = vpop.trf.xlu0
    %v288 = vpop.trf.xlu0
    %v289 = vpop.trf.xlu0
    %v290 = vpop.trf.xlu0
    %v291 = vpop.trf.xlu0
    %v292 = vpop.trf.xlu0
    %v293 = vpop.trf.xlu0
    %v294 = vpop.trf.xlu0
    %v295 = vpop.trf.xlu0
    %v298 = vunpack.c.l.b16 %v258
    %v299 = vunpack.c.l.b16 %v259
    %v300 = vpack.c.b16 %v299, %v298
    %v303 = vsel %vm189, %v280, 0
    %v306 = vsel %vm189, %v282, 0
    %v309 = vsel %vm189, %v284, 0
    %v312 = vsel %vm189, %v286, 0
    %v315 = vsel %vm189, %v288, 0
    %v318 = vsel %vm189, %v290, 0
    %v321 = vsel %vm189, %v292, 0
    %v324 = vsel %vm189, %v294, 0
    %v327 = vsel %vm189, %v281, 0
    %v330 = vsel %vm189, %v283, 0
    %v333 = vsel %vm189, %v285, 0
    %v336 = vsel %vm189, %v287, 0
    %v339 = vsel %vm189, %v289, 0
    %v342 = vsel %vm189, %v291, 0
    %v345 = vsel %vm189, %v293, 0
    %v348 = vsel %vm189, %v295, 0
    %350 = vmatpush.bf16.msra.mxu0 0
    %351 = vmatpush.bf16.msra.mxu0 0
    %352 = vmatpush.bf16.msra.mxu0 0
    %353 = vmatpush.bf16.msra.mxu0 0
    %354 = vmatpush.bf16.msra.mxu0 0
    %355 = vmatpush.bf16.msra.mxu0 0
    %356 = vmatpush.bf16.msra.mxu0 0
    %357 = vmatpush.bf16.msra.mxu0 %v300
    %358 = vmatmul.bf16.gmra.mxu0 %v303
    %v359 = vpop.f32.mrf.mxu0
    %v360 = vadd.f32 0.0, %v359
    %v361 = vpop.f32.mrf.mxu0
    %v362 = vadd.f32 0.0, %v361
    %363 = vmatmul.bf16.gmra.mxu0 %v306
    %v364 = vpop.f32.mrf.mxu0
    %v365 = vadd.f32 0.0, %v364
    %v366 = vpop.f32.mrf.mxu0
    %v367 = vadd.f32 0.0, %v366
    %368 = vmatmul.bf16.gmra.mxu0 %v309
    %v369 = vpop.f32.mrf.mxu0
    %v370 = vadd.f32 0.0, %v369
    %v371 = vpop.f32.mrf.mxu0
    %v372 = vadd.f32 0.0, %v371
    %373 = vmatmul.bf16.gmra.mxu0 %v312
    %v374 = vpop.f32.mrf.mxu0
    %v375 = vadd.f32 0.0, %v374
    %v376 = vpop.f32.mrf.mxu0
    %v377 = vadd.f32 0.0, %v376
    %378 = vmatmul.bf16.gmra.mxu0 %v315
    %v379 = vpop.f32.mrf.mxu0
    %v380 = vadd.f32 0.0, %v379
    %v381 = vpop.f32.mrf.mxu0
    %v382 = vadd.f32 0.0, %v381
    %383 = vmatmul.bf16.gmra.mxu0 %v318
    %v384 = vpop.f32.mrf.mxu0
    %v385 = vadd.f32 0.0, %v384
    %v386 = vpop.f32.mrf.mxu0
    %v387 = vadd.f32 0.0, %v386
    %388 = vmatmul.bf16.gmra.mxu0 %v321
    %v389 = vpop.f32.mrf.mxu0
    %v390 = vadd.f32 0.0, %v389
    %v391 = vpop.f32.mrf.mxu0
    %v392 = vadd.f32 0.0, %v391
    %393 = vmatmul.bf16.gmra.mxu0 %v324
    %v394 = vpop.f32.mrf.mxu0
    %v395 = vadd.f32 0.0, %v394
    %v396 = vpop.f32.mrf.mxu0
    %v397 = vadd.f32 0.0, %v396
    %398 = vmatmul.bf16.gmra.mxu0 %v327
    %v399 = vpop.f32.mrf.mxu0
    %v400 = vadd.f32 0.0, %v399
    %v401 = vpop.f32.mrf.mxu0
    %v402 = vadd.f32 0.0, %v401
    %403 = vmatmul.bf16.gmra.mxu0 %v330
    %v404 = vpop.f32.mrf.mxu0
    %v405 = vadd.f32 0.0, %v404
    %v406 = vpop.f32.mrf.mxu0
    %v407 = vadd.f32 0.0, %v406
    %408 = vmatmul.bf16.gmra.mxu0 %v333
    %v409 = vpop.f32.mrf.mxu0
    %v410 = vadd.f32 0.0, %v409
    %v411 = vpop.f32.mrf.mxu0
    %v412 = vadd.f32 0.0, %v411
    %413 = vmatmul.bf16.gmra.mxu0 %v336
    %v414 = vpop.f32.mrf.mxu0
    %v415 = vadd.f32 0.0, %v414
    %v416 = vpop.f32.mrf.mxu0
    %v417 = vadd.f32 0.0, %v416
    %418 = vmatmul.bf16.gmra.mxu0 %v339
    %v419 = vpop.f32.mrf.mxu0
    %v420 = vadd.f32 0.0, %v419
    %v421 = vpop.f32.mrf.mxu0
    %v422 = vadd.f32 0.0, %v421
    %423 = vmatmul.bf16.gmra.mxu0 %v342
    %v424 = vpop.f32.mrf.mxu0
    %v425 = vadd.f32 0.0, %v424
    %v426 = vpop.f32.mrf.mxu0
    %v427 = vadd.f32 0.0, %v426
    %428 = vmatmul.bf16.gmra.mxu0 %v345
    %v429 = vpop.f32.mrf.mxu0
    %v430 = vadd.f32 0.0, %v429
    %v431 = vpop.f32.mrf.mxu0
    %v432 = vadd.f32 0.0, %v431
    %433 = vmatmul.bf16.gmra.mxu0 %v348
    %v434 = vpop.f32.mrf.mxu0
    %v435 = vadd.f32 0.0, %v434
    %v436 = vpop.f32.mrf.mxu0
    %v437 = vadd.f32 0.0, %v436
    %438 = vdwg.mxu0
    %v439 = vmax.f32 %v360, %v370
    %v440 = vmax.f32 %v362, %v372
    %v441 = vmax.f32 %v365, %v375
    %v442 = vmax.f32 %v367, %v377
    %v443 = vmax.f32 %v439, %v380
    %v444 = vmax.f32 %v440, %v382
    %v445 = vmax.f32 %v441, %v385
    %v446 = vmax.f32 %v442, %v387
    %v447 = vmax.f32 %v443, %v390
    %v448 = vmax.f32 %v444, %v392
    %v449 = vmax.f32 %v445, %v395
    %v450 = vmax.f32 %v446, %v397
    %v451 = vmax.f32 %v447, %v400
    %v452 = vmax.f32 %v448, %v402
    %v453 = vmax.f32 %v449, %v405
    %v454 = vmax.f32 %v450, %v407
    %v455 = vmax.f32 %v451, %v410
    %v456 = vmax.f32 %v452, %v412
    %v457 = vmax.f32 %v453, %v415
    %v458 = vmax.f32 %v454, %v417
    %v459 = vmax.f32 %v455, %v420
    %v460 = vmax.f32 %v456, %v422
    %v461 = vmax.f32 %v457, %v425
    %v462 = vmax.f32 %v458, %v427
    %v463 = vmax.f32 %v459, %v430
    %v464 = vmax.f32 %v460, %v432
    %v465 = vmax.f32 %v461, %v435
    %v466 = vmax.f32 %v462, %v437
    %v467 = vmax.f32 %v463, %v464
    %v468 = vmax.f32 %v465, %v466
    %v469 = vmax.f32 %v467, %v468
    %v470 = vrot.slane %v469, 4
    %v471 = vmax.f32 %v469, %v470
    %v472 = vrot.slane %v471, 2
    %v473 = vmax.f32 %v471, %v472
    %v474 = vrot.slane %v473, 1
    %v475 = vmax.f32 %v473, %v474
    %v476 = vsub.f32 %v360, %v475
    %v477 = vsub.f32 %v362, %v475
    %v478 = vsub.f32 %v365, %v475
    %v479 = vsub.f32 %v367, %v475
    %v480 = vsub.f32 %v370, %v475
    %v481 = vsub.f32 %v372, %v475
    %v482 = vsub.f32 %v375, %v475
    %v483 = vsub.f32 %v377, %v475
    %v484 = vsub.f32 %v380, %v475
    %v485 = vsub.f32 %v382, %v475
    %v486 = vsub.f32 %v385, %v475
    %v487 = vsub.f32 %v387, %v475
    %v488 = vsub.f32 %v390, %v475
    %v489 = vsub.f32 %v392, %v475
    %v490 = vsub.f32 %v395, %v475
    %v491 = vsub.f32 %v397, %v475
    %v492 = vsub.f32 %v400, %v475
    %v493 = vsub.f32 %v402, %v475
    %v494 = vsub.f32 %v405, %v475
    %v495 = vsub.f32 %v407, %v475
    %v496 = vsub.f32 %v410, %v475
    %v497 = vsub.f32 %v412, %v475
    %v498 = vsub.f32 %v415, %v475
    %v499 = vsub.f32 %v417, %v475
    %v500 = vsub.f32 %v420, %v475
    %v501 = vsub.f32 %v422, %v475
    %v502 = vsub.f32 %v425, %v475
    %v503 = vsub.f32 %v427, %v475
    %v504 = vsub.f32 %v430, %v475
    %v505 = vsub.f32 %v432, %v475
    %v506 = vsub.f32 %v435, %v475
    %v507 = vsub.f32 %v437, %v475
    %v508 = vpack.c.bf16 %v477, %v476
    %v509 = vpack.c.bf16 %v479, %v478
    %v510 = vpack.c.bf16 %v481, %v480
    %v511 = vpack.c.bf16 %v483, %v482
    %v512 = vpack.c.bf16 %v485, %v484
    %v513 = vpack.c.bf16 %v487, %v486
    %v514 = vpack.c.bf16 %v489, %v488
    %v515 = vpack.c.bf16 %v491, %v490
    %v516 = vpack.c.bf16 %v493, %v492
    %v517 = vpack.c.bf16 %v495, %v494
    %v518 = vpack.c.bf16 %v497, %v496
    %v519 = vpack.c.bf16 %v499, %v498
    %v520 = vpack.c.bf16 %v501, %v500
    %v521 = vpack.c.bf16 %v503, %v502
    %v522 = vpack.c.bf16 %v505, %v504
    %v523 = vpack.c.bf16 %v507, %v506
    %v524 = vunpack.c.l.bf16 %v508
    %v525 = vunpack.c.h.bf16 %v508
    %v526 = vunpack.c.l.bf16 %v509
    %v527 = vunpack.c.h.bf16 %v509
    %v528 = vunpack.c.l.bf16 %v510
    %v529 = vunpack.c.h.bf16 %v510
    %v530 = vunpack.c.l.bf16 %v511
    %v531 = vunpack.c.h.bf16 %v511
    %v532 = vunpack.c.l.bf16 %v512
    %v533 = vunpack.c.h.bf16 %v512
    %v534 = vunpack.c.l.bf16 %v513
    %v535 = vunpack.c.h.bf16 %v513
    %v536 = vunpack.c.l.bf16 %v514
    %v537 = vunpack.c.h.bf16 %v514
    %v538 = vunpack.c.l.bf16 %v515
    %v539 = vunpack.c.h.bf16 %v515
    %v540 = vunpack.c.l.bf16 %v516
    %v541 = vunpack.c.h.bf16 %v516
    %v542 = vunpack.c.l.bf16 %v517
    %v543 = vunpack.c.h.bf16 %v517
    %v544 = vunpack.c.l.bf16 %v518
    %v545 = vunpack.c.h.bf16 %v518
    %v546 = vunpack.c.l.bf16 %v519
    %v547 = vunpack.c.h.bf16 %v519
    %v548 = vunpack.c.l.bf16 %v520
    %v549 = vunpack.c.h.bf16 %v520
    %v550 = vunpack.c.l.bf16 %v521
    %v551 = vunpack.c.h.bf16 %v521
    %v552 = vunpack.c.l.bf16 %v522
    %v553 = vunpack.c.h.bf16 %v522
    %v554 = vunpack.c.l.bf16 %v523
    %v555 = vunpack.c.h.bf16 %v523
    %v556 = vmul.f32 %v524, 1.442695
    %v557 = vpow.pop %v556
    %v558 = vmul.f32 %v525, 1.442695
    %v559 = vpow.pop %v558
    %v560 = vmul.f32 %v526, 1.442695
    %v561 = vpow.pop %v560
    %v562 = vmul.f32 %v527, 1.442695
    %v563 = vpow.pop %v562
    %v564 = vmul.f32 %v528, 1.442695
    %v565 = vpow.pop %v564
    %v566 = vmul.f32 %v529, 1.442695
    %v567 = vpow.pop %v566
    %v568 = vmul.f32 %v530, 1.442695
    %v569 = vpow.pop %v568
    %v570 = vmul.f32 %v531, 1.442695
    %v571 = vpow.pop %v570
    %v572 = vmul.f32 %v532, 1.442695
    %v573 = vpow.pop %v572
    %v574 = vmul.f32 %v533, 1.442695
    %v575 = vpow.pop %v574
    %v576 = vmul.f32 %v534, 1.442695
    %v577 = vpow.pop %v576
    %v578 = vmul.f32 %v535, 1.442695
    %v579 = vpow.pop %v578
    %v580 = vmul.f32 %v536, 1.442695
    %v581 = vpow.pop %v580
    %v582 = vmul.f32 %v537, 1.442695
    %v583 = vpow.pop %v582
    %v584 = vmul.f32 %v538, 1.442695
    %v585 = vpow.pop %v584
    %v586 = vmul.f32 %v539, 1.442695
    %v587 = vpow.pop %v586
    %v588 = vmul.f32 %v540, 1.442695
    %v589 = vpow.pop %v588
    %v590 = vmul.f32 %v541, 1.442695
    %v591 = vpow.pop %v590
    %v592 = vmul.f32 %v542, 1.442695
    %v593 = vpow.pop %v592
    %v594 = vmul.f32 %v543, 1.442695
    %v595 = vpow.pop %v594
    %v596 = vmul.f32 %v544, 1.442695
    %v597 = vpow.pop %v596
    %v598 = vmul.f32 %v545, 1.442695
    %v599 = vpow.pop %v598
    %v600 = vmul.f32 %v546, 1.442695
    %v601 = vpow.pop %v600
    %v602 = vmul.f32 %v547, 1.442695
    %v603 = vpow.pop %v602
    %v604 = vmul.f32 %v548, 1.442695
    %v605 = vpow.pop %v604
    %v606 = vmul.f32 %v549, 1.442695
    %v607 = vpow.pop %v606
    %v608 = vmul.f32 %v550, 1.442695
    %v609 = vpow.pop %v608
    %v610 = vmul.f32 %v551, 1.442695
    %v611 = vpow.pop %v610
    %v612 = vmul.f32 %v552, 1.442695
    %v613 = vpow.pop %v612
    %v614 = vmul.f32 %v553, 1.442695
    %v615 = vpow.pop %v614
    %v616 = vmul.f32 %v554, 1.442695
    %v617 = vpow.pop %v616
    %v618 = vmul.f32 %v555, 1.442695
    %v619 = vpow.pop %v618
    %v620 = vpack.c.bf16 %v559, %v557
    %v621 = vpack.c.bf16 %v563, %v561
    %v622 = vpack.c.bf16 %v567, %v565
    %v623 = vpack.c.bf16 %v571, %v569
    %v624 = vpack.c.bf16 %v575, %v573
    %v625 = vpack.c.bf16 %v579, %v577
    %v626 = vpack.c.bf16 %v583, %v581
    %v627 = vpack.c.bf16 %v587, %v585
    %v628 = vpack.c.bf16 %v591, %v589
    %v629 = vpack.c.bf16 %v595, %v593
    %v630 = vpack.c.bf16 %v599, %v597
    %v631 = vpack.c.bf16 %v603, %v601
    %v632 = vpack.c.bf16 %v607, %v605
    %v633 = vpack.c.bf16 %v611, %v609
    %v634 = vpack.c.bf16 %v615, %v613
    %v635 = vpack.c.bf16 %v619, %v617
    %636 = vmatpush.bf16.msra.mxu0 %v627
    %637 = vmatpush.bf16.msra.mxu0 %v626
    %638 = vmatpush.bf16.msra.mxu0 %v625
    %639 = vmatpush.bf16.msra.mxu0 %v624
    %640 = vmatpush.bf16.msra.mxu0 %v623
    %641 = vmatpush.bf16.msra.mxu0 %v622
    %642 = vmatpush.bf16.msra.mxu0 %v621
    %643 = vmatpush.bf16.msra.mxu0 %v620
    %644 = vmatmul.bf16.gmra.mxu0 %v262
    %v645 = vpop.f32.mrf.mxu0
    %v646 = vadd.f32 0.0, %v645
    %v647 = vpop.f32.mrf.mxu0
    %v648 = vadd.f32 0.0, %v647
    %649 = vmatmul.bf16.gmra.mxu0 %v264
    %v650 = vpop.f32.mrf.mxu0
    %v651 = vadd.f32 0.0, %v650
    %v652 = vpop.f32.mrf.mxu0
    %653 = vdwg.mxu0
    %654 = vmatpush.bf16.msra.mxu0 %v635
    %655 = vmatpush.bf16.msra.mxu0 %v634
    %656 = vmatpush.bf16.msra.mxu0 %v633
    %657 = vmatpush.bf16.msra.mxu0 %v632
    %658 = vmatpush.bf16.msra.mxu0 %v631
    %659 = vmatpush.bf16.msra.mxu0 %v630
    %660 = vmatpush.bf16.msra.mxu0 %v629
    %661 = vmatpush.bf16.msra.mxu0 %v628
    %662 = vmatmul.bf16.gmra.mxu0 %v263
    %v663 = vpop.f32.mrf.mxu0
    %v664 = vadd.f32 %v646, %v663
    %v665 = vpop.f32.mrf.mxu0
    %v666 = vadd.f32 %v648, %v665
    %667 = vmatmul.bf16.gmra.mxu0 %v265
    %v668 = vpop.f32.mrf.mxu0
    %v669 = vadd.f32 %v651, %v668
    %v670 = vpop.f32.mrf.mxu0
    %671 = vdwg.mxu0
    %v672 = vrcp.pop %v669
    %v673 = vperm.slane %v672, 0
    %v674 = vmul.f32 %v664, %v673
    %v675 = vmul.f32 %v666, %v673
    %v676 = vmax.f32 %v674, 0.0
    %v677 = vmax.f32 %v675, 0.0
    %v678 = vpack.c.bf16 %v676, %v676
    %v679 = vpack.c.bf16 %v677, %v677
    %v682 = vunpack.c.l.b16 %v678
    %v683 = vunpack.c.l.b16 %v679
    %v684 = vpack.c.b16 %v683, %v682
    %v688 = vunpack.c.l.b16 %v270
    %v689 = vunpack.c.l.b16 %v271
    %v690 = vpack.c.b16 %v689, %v688
    %v696 = vunpack.c.l.b16 %v50
    %v697 = vunpack.c.l.b16 %v51
    %v698 = vunpack.c.l.b16 %v52
    %v699 = vunpack.c.l.b16 %v53
    %v700 = vpack.c.b16 %v697, %v696
    %v701 = vpack.c.b16 %v699, %v698
    %vm702 = vcmask 269312
    %v704 = vsel %vm702, %v700, 0
    %v707 = vsel %vm702, %v701, 0
    %vm709 = vcmask 1040384
    %v710 = vsel 0, 4294967295, 65535
    %v711 = vsel %vm709, %v710, 0
    %v713 = vand.u32 1065369472, %v711
    %715 = vmatpush.bf16.msra.mxu0 0
    %716 = vmatpush.bf16.msra.mxu0 0
    %717 = vmatpush.bf16.msra.mxu0 0
    %718 = vmatpush.bf16.msra.mxu0 0
    %719 = vmatpush.bf16.msra.mxu0 0
    %720 = vmatpush.bf16.msra.mxu0 %v713
    %721 = vmatpush.bf16.msra.mxu0 %v690
    %722 = vmatpush.bf16.msra.mxu0 %v684
    %723 = vmatmul.bf16.gmra.mxu0 %v704
    %v724 = vpop.f32.mrf.mxu0
    %v725 = vadd.f32 0.0, %v724
    %v726 = vpop.f32.mrf.mxu0
    %v727 = vadd.f32 0.0, %v726
    %728 = vmatmul.bf16.gmra.mxu0 %v707
    %v729 = vpop.f32.mrf.mxu0
    %v730 = vadd.f32 0.0, %v729
    %v731 = vpop.f32.mrf.mxu0
    %v732 = vadd.f32 0.0, %v731
    %733 = vdwg.mxu0
    %734 = vst [vmem:[#allocation5] sm:$0xff] %v725
    %735 = vst [vmem:[#allocation5 + $0x10] sm:$0xff] %v727
    %736 = vst [vmem:[#allocation5 + $0x20] sm:$0xff] %v730
    %737 = vst [vmem:[#allocation5 + $0x30] sm:$0xff] %v732
    %v738 = vunpack.c.h.b16 %v258
    %v739 = vunpack.c.h.b16 %v259
    %v740 = vpack.c.b16 %v739, %v738
    %742 = vmatpush.bf16.msra.mxu0 0
    %743 = vmatpush.bf16.msra.mxu0 0
    %744 = vmatpush.bf16.msra.mxu0 0
    %745 = vmatpush.bf16.msra.mxu0 0
    %746 = vmatpush.bf16.msra.mxu0 0
    %747 = vmatpush.bf16.msra.mxu0 0
    %748 = vmatpush.bf16.msra.mxu0 0
    %749 = vmatpush.bf16.msra.mxu0 %v740
    %750 = vmatmul.bf16.gmra.mxu0 %v303
    %v751 = vpop.f32.mrf.mxu0
    %v752 = vadd.f32 0.0, %v751
    %v753 = vpop.f32.mrf.mxu0
    %v754 = vadd.f32 0.0, %v753
    %755 = vmatmul.bf16.gmra.mxu0 %v306
    %v756 = vpop.f32.mrf.mxu0
    %v757 = vadd.f32 0.0, %v756
    %v758 = vpop.f32.mrf.mxu0
    %v759 = vadd.f32 0.0, %v758
    %760 = vmatmul.bf16.gmra.mxu0 %v309
    %v761 = vpop.f32.mrf.mxu0
    %v762 = vadd.f32 0.0, %v761
    %v763 = vpop.f32.mrf.mxu0
    %v764 = vadd.f32 0.0, %v763
    %765 = vmatmul.bf16.gmra.mxu0 %v312
    %v766 = vpop.f32.mrf.mxu0
    %v767 = vadd.f32 0.0, %v766
    %v768 = vpop.f32.mrf.mxu0
    %v769 = vadd.f32 0.0, %v768
    %770 = vmatmul.bf16.gmra.mxu0 %v315
    %v771 = vpop.f32.mrf.mxu0
    %v772 = vadd.f32 0.0, %v771
    %v773 = vpop.f32.mrf.mxu0
    %v774 = vadd.f32 0.0, %v773
    %775 = vmatmul.bf16.gmra.mxu0 %v318
    %v776 = vpop.f32.mrf.mxu0
    %v777 = vadd.f32 0.0, %v776
    %v778 = vpop.f32.mrf.mxu0
    %v779 = vadd.f32 0.0, %v778
    %780 = vmatmul.bf16.gmra.mxu0 %v321
    %v781 = vpop.f32.mrf.mxu0
    %v782 = vadd.f32 0.0, %v781
    %v783 = vpop.f32.mrf.mxu0
    %v784 = vadd.f32 0.0, %v783
    %785 = vmatmul.bf16.gmra.mxu0 %v324
    %v786 = vpop.f32.mrf.mxu0
    %v787 = vadd.f32 0.0, %v786
    %v788 = vpop.f32.mrf.mxu0
    %v789 = vadd.f32 0.0, %v788
    %790 = vmatmul.bf16.gmra.mxu0 %v327
    %v791 = vpop.f32.mrf.mxu0
    %v792 = vadd.f32 0.0, %v791
    %v793 = vpop.f32.mrf.mxu0
    %v794 = vadd.f32 0.0, %v793
    %795 = vmatmul.bf16.gmra.mxu0 %v330
    %v796 = vpop.f32.mrf.mxu0
    %v797 = vadd.f32 0.0, %v796
    %v798 = vpop.f32.mrf.mxu0
    %v799 = vadd.f32 0.0, %v798
    %800 = vmatmul.bf16.gmra.mxu0 %v333
    %v801 = vpop.f32.mrf.mxu0
    %v802 = vadd.f32 0.0, %v801
    %v803 = vpop.f32.mrf.mxu0
    %v804 = vadd.f32 0.0, %v803
    %805 = vmatmul.bf16.gmra.mxu0 %v336
    %v806 = vpop.f32.mrf.mxu0
    %v807 = vadd.f32 0.0, %v806
    %v808 = vpop.f32.mrf.mxu0
    %v809 = vadd.f32 0.0, %v808
    %810 = vmatmul.bf16.gmra.mxu0 %v339
    %v811 = vpop.f32.mrf.mxu0
    %v812 = vadd.f32 0.0, %v811
    %v813 = vpop.f32.mrf.mxu0
    %v814 = vadd.f32 0.0, %v813
    %815 = vmatmul.bf16.gmra.mxu0 %v342
    %v816 = vpop.f32.mrf.mxu0
    %v817 = vadd.f32 0.0, %v816
    %v818 = vpop.f32.mrf.mxu0
    %v819 = vadd.f32 0.0, %v818
    %820 = vmatmul.bf16.gmra.mxu0 %v345
    %v821 = vpop.f32.mrf.mxu0
    %v822 = vadd.f32 0.0, %v821
    %v823 = vpop.f32.mrf.mxu0
    %v824 = vadd.f32 0.0, %v823
    %825 = vmatmul.bf16.gmra.mxu0 %v348
    %v826 = vpop.f32.mrf.mxu0
    %v827 = vadd.f32 0.0, %v826
    %v828 = vpop.f32.mrf.mxu0
    %v829 = vadd.f32 0.0, %v828
    %830 = vdwg.mxu0
    %v831 = vmax.f32 %v752, %v762
    %v832 = vmax.f32 %v754, %v764
    %v833 = vmax.f32 %v757, %v767
    %v834 = vmax.f32 %v759, %v769
    %v835 = vmax.f32 %v831, %v772
    %v836 = vmax.f32 %v832, %v774
    %v837 = vmax.f32 %v833, %v777
    %v838 = vmax.f32 %v834, %v779
    %v839 = vmax.f32 %v835, %v782
    %v840 = vmax.f32 %v836, %v784
    %v841 = vmax.f32 %v837, %v787
    %v842 = vmax.f32 %v838, %v789
    %v843 = vmax.f32 %v839, %v792
    %v844 = vmax.f32 %v840, %v794
    %v845 = vmax.f32 %v841, %v797
    %v846 = vmax.f32 %v842, %v799
    %v847 = vmax.f32 %v843, %v802
    %v848 = vmax.f32 %v844, %v804
    %v849 = vmax.f32 %v845, %v807
    %v850 = vmax.f32 %v846, %v809
    %v851 = vmax.f32 %v847, %v812
    %v852 = vmax.f32 %v848, %v814
    %v853 = vmax.f32 %v849, %v817
    %v854 = vmax.f32 %v850, %v819
    %v855 = vmax.f32 %v851, %v822
    %v856 = vmax.f32 %v852, %v824
    %v857 = vmax.f32 %v853, %v827
    %v858 = vmax.f32 %v854, %v829
    %v859 = vmax.f32 %v855, %v856
    %v860 = vmax.f32 %v857, %v858
    %v861 = vmax.f32 %v859, %v860
    %v862 = vrot.slane %v861, 4
    %v863 = vmax.f32 %v861, %v862
    %v864 = vrot.slane %v863, 2
    %v865 = vmax.f32 %v863, %v864
    %v866 = vrot.slane %v865, 1
    %v867 = vmax.f32 %v865, %v866
    %v868 = vsub.f32 %v752, %v867
    %v869 = vsub.f32 %v754, %v867
    %v870 = vsub.f32 %v757, %v867
    %v871 = vsub.f32 %v759, %v867
    %v872 = vsub.f32 %v762, %v867
    %v873 = vsub.f32 %v764, %v867
    %v874 = vsub.f32 %v767, %v867
    %v875 = vsub.f32 %v769, %v867
    %v876 = vsub.f32 %v772, %v867
    %v877 = vsub.f32 %v774, %v867
    %v878 = vsub.f32 %v777, %v867
    %v879 = vsub.f32 %v779, %v867
    %v880 = vsub.f32 %v782, %v867
    %v881 = vsub.f32 %v784, %v867
    %v882 = vsub.f32 %v787, %v867
    %v883 = vsub.f32 %v789, %v867
    %v884 = vsub.f32 %v792, %v867
    %v885 = vsub.f32 %v794, %v867
    %v886 = vsub.f32 %v797, %v867
    %v887 = vsub.f32 %v799, %v867
    %v888 = vsub.f32 %v802, %v867
    %v889 = vsub.f32 %v804, %v867
    %v890 = vsub.f32 %v807, %v867
    %v891 = vsub.f32 %v809, %v867
    %v892 = vsub.f32 %v812, %v867
    %v893 = vsub.f32 %v814, %v867
    %v894 = vsub.f32 %v817, %v867
    %v895 = vsub.f32 %v819, %v867
    %v896 = vsub.f32 %v822, %v867
    %v897 = vsub.f32 %v824, %v867
    %v898 = vsub.f32 %v827, %v867
    %v899 = vsub.f32 %v829, %v867
    %v900 = vpack.c.bf16 %v869, %v868
    %v901 = vpack.c.bf16 %v871, %v870
    %v902 = vpack.c.bf16 %v873, %v872
    %v903 = vpack.c.bf16 %v875, %v874
    %v904 = vpack.c.bf16 %v877, %v876
    %v905 = vpack.c.bf16 %v879, %v878
    %v906 = vpack.c.bf16 %v881, %v880
    %v907 = vpack.c.bf16 %v883, %v882
    %v908 = vpack.c.bf16 %v885, %v884
    %v909 = vpack.c.bf16 %v887, %v886
    %v910 = vpack.c.bf16 %v889, %v888
    %v911 = vpack.c.bf16 %v891, %v890
    %v912 = vpack.c.bf16 %v893, %v892
    %v913 = vpack.c.bf16 %v895, %v894
    %v914 = vpack.c.bf16 %v897, %v896
    %v915 = vpack.c.bf16 %v899, %v898
    %v916 = vunpack.c.l.bf16 %v900
    %v917 = vunpack.c.h.bf16 %v900
    %v918 = vunpack.c.l.bf16 %v901
    %v919 = vunpack.c.h.bf16 %v901
    %v920 = vunpack.c.l.bf16 %v902
    %v921 = vunpack.c.h.bf16 %v902
    %v922 = vunpack.c.l.bf16 %v903
    %v923 = vunpack.c.h.bf16 %v903
    %v924 = vunpack.c.l.bf16 %v904
    %v925 = vunpack.c.h.bf16 %v904
    %v926 = vunpack.c.l.bf16 %v905
    %v927 = vunpack.c.h.bf16 %v905
    %v928 = vunpack.c.l.bf16 %v906
    %v929 = vunpack.c.h.bf16 %v906
    %v930 = vunpack.c.l.bf16 %v907
    %v931 = vunpack.c.h.bf16 %v907
    %v932 = vunpack.c.l.bf16 %v908
    %v933 = vunpack.c.h.bf16 %v908
    %v934 = vunpack.c.l.bf16 %v909
    %v935 = vunpack.c.h.bf16 %v909
    %v936 = vunpack.c.l.bf16 %v910
    %v937 = vunpack.c.h.bf16 %v910
    %v938 = vunpack.c.l.bf16 %v911
    %v939 = vunpack.c.h.bf16 %v911
    %v940 = vunpack.c.l.bf16 %v912
    %v941 = vunpack.c.h.bf16 %v912
    %v942 = vunpack.c.l.bf16 %v913
    %v943 = vunpack.c.h.bf16 %v913
    %v944 = vunpack.c.l.bf16 %v914
    %v945 = vunpack.c.h.bf16 %v914
    %v946 = vunpack.c.l.bf16 %v915
    %v947 = vunpack.c.h.bf16 %v915
    %v948 = vmul.f32 %v916, 1.442695
    %v949 = vpow.pop %v948
    %v950 = vmul.f32 %v917, 1.442695
    %v951 = vpow.pop %v950
    %v952 = vmul.f32 %v918, 1.442695
    %v953 = vpow.pop %v952
    %v954 = vmul.f32 %v919, 1.442695
    %v955 = vpow.pop %v954
    %v956 = vmul.f32 %v920, 1.442695
    %v957 = vpow.pop %v956
    %v958 = vmul.f32 %v921, 1.442695
    %v959 = vpow.pop %v958
    %v960 = vmul.f32 %v922, 1.442695
    %v961 = vpow.pop %v960
    %v962 = vmul.f32 %v923, 1.442695
    %v963 = vpow.pop %v962
    %v964 = vmul.f32 %v924, 1.442695
    %v965 = vpow.pop %v964
    %v966 = vmul.f32 %v925, 1.442695
    %v967 = vpow.pop %v966
    %v968 = vmul.f32 %v926, 1.442695
    %v969 = vpow.pop %v968
    %v970 = vmul.f32 %v927, 1.442695
    %v971 = vpow.pop %v970
    %v972 = vmul.f32 %v928, 1.442695
    %v973 = vpow.pop %v972
    %v974 = vmul.f32 %v929, 1.442695
    %v975 = vpow.pop %v974
    %v976 = vmul.f32 %v930, 1.442695
    %v977 = vpow.pop %v976
    %v978 = vmul.f32 %v931, 1.442695
    %v979 = vpow.pop %v978
    %v980 = vmul.f32 %v932, 1.442695
    %v981 = vpow.pop %v980
    %v982 = vmul.f32 %v933, 1.442695
    %v983 = vpow.pop %v982
    %v984 = vmul.f32 %v934, 1.442695
    %v985 = vpow.pop %v984
    %v986 = vmul.f32 %v935, 1.442695
    %v987 = vpow.pop %v986
    %v988 = vmul.f32 %v936, 1.442695
    %v989 = vpow.pop %v988
    %v990 = vmul.f32 %v937, 1.442695
    %v991 = vpow.pop %v990
    %v992 = vmul.f32 %v938, 1.442695
    %v993 = vpow.pop %v992
    %v994 = vmul.f32 %v939, 1.442695
    %v995 = vpow.pop %v994
    %v996 = vmul.f32 %v940, 1.442695
    %v997 = vpow.pop %v996
    %v998 = vmul.f32 %v941, 1.442695
    %v999 = vpow.pop %v998
    %v1000 = vmul.f32 %v942, 1.442695
    %v1001 = vpow.pop %v1000
    %v1002 = vmul.f32 %v943, 1.442695
    %v1003 = vpow.pop %v1002
    %v1004 = vmul.f32 %v944, 1.442695
    %v1005 = vpow.pop %v1004
    %v1006 = vmul.f32 %v945, 1.442695
    %v1007 = vpow.pop %v1006
    %v1008 = vmul.f32 %v946, 1.442695
    %v1009 = vpow.pop %v1008
    %v1010 = vmul.f32 %v947, 1.442695
    %v1011 = vpow.pop %v1010
    %v1012 = vpack.c.bf16 %v951, %v949
    %v1013 = vpack.c.bf16 %v955, %v953
    %v1014 = vpack.c.bf16 %v959, %v957
    %v1015 = vpack.c.bf16 %v963, %v961
    %v1016 = vpack.c.bf16 %v967, %v965
    %v1017 = vpack.c.bf16 %v971, %v969
    %v1018 = vpack.c.bf16 %v975, %v973
    %v1019 = vpack.c.bf16 %v979, %v977
    %v1020 = vpack.c.bf16 %v983, %v981
    %v1021 = vpack.c.bf16 %v987, %v985
    %v1022 = vpack.c.bf16 %v991, %v989
    %v1023 = vpack.c.bf16 %v995, %v993
    %v1024 = vpack.c.bf16 %v999, %v997
    %v1025 = vpack.c.bf16 %v1003, %v1001
    %v1026 = vpack.c.bf16 %v1007, %v1005
    %v1027 = vpack.c.bf16 %v1011, %v1009
    %1028 = vmatpush.bf16.msra.mxu0 %v1019
    %1029 = vmatpush.bf16.msra.mxu0 %v1018
    %1030 = vmatpush.bf16.msra.mxu0 %v1017
    %1031 = vmatpush.bf16.msra.mxu0 %v1016
    %1032 = vmatpush.bf16.msra.mxu0 %v1015
    %1033 = vmatpush.bf16.msra.mxu0 %v1014
    %1034 = vmatpush.bf16.msra.mxu0 %v1013
    %1035 = vmatpush.bf16.msra.mxu0 %v1012
    %1036 = vmatmul.bf16.gmra.mxu0 %v262
    %v1037 = vpop.f32.mrf.mxu0
    %v1038 = vadd.f32 0.0, %v1037
    %v1039 = vpop.f32.mrf.mxu0
    %v1040 = vadd.f32 0.0, %v1039
    %1041 = vmatmul.bf16.gmra.mxu0 %v264
    %v1042 = vpop.f32.mrf.mxu0
    %v1043 = vadd.f32 0.0, %v1042
    %v1044 = vpop.f32.mrf.mxu0
    %1045 = vdwg.mxu0
    %1046 = vmatpush.bf16.msra.mxu0 %v1027
    %1047 = vmatpush.bf16.msra.mxu0 %v1026
    %1048 = vmatpush.bf16.msra.mxu0 %v1025
    %1049 = vmatpush.bf16.msra.mxu0 %v1024
    %1050 = vmatpush.bf16.msra.mxu0 %v1023
    %1051 = vmatpush.bf16.msra.mxu0 %v1022
    %1052 = vmatpush.bf16.msra.mxu0 %v1021
    %1053 = vmatpush.bf16.msra.mxu0 %v1020
    %1054 = vmatmul.bf16.gmra.mxu0 %v263
    %v1055 = vpop.f32.mrf.mxu0
    %v1056 = vadd.f32 %v1038, %v1055
    %v1057 = vpop.f32.mrf.mxu0
    %v1058 = vadd.f32 %v1040, %v1057
    %1059 = vmatmul.bf16.gmra.mxu0 %v265
    %v1060 = vpop.f32.mrf.mxu0
    %v1061 = vadd.f32 %v1043, %v1060
    %v1062 = vpop.f32.mrf.mxu0
    %1063 = vdwg.mxu0
    %v1064 = vrcp.pop %v1061
    %v1065 = vperm.slane %v1064, 0
    %v1066 = vmul.f32 %v1056, %v1065
    %v1067 = vmul.f32 %v1058, %v1065
    %v1068 = vmax.f32 %v1066, 0.0
    %v1069 = vmax.f32 %v1067, 0.0
    %v1070 = vpack.c.bf16 %v1068, %v1068
    %v1071 = vpack.c.bf16 %v1069, %v1069
    %v1074 = vunpack.c.l.b16 %v1070
    %v1075 = vunpack.c.l.b16 %v1071
    %v1076 = vpack.c.b16 %v1075, %v1074
    %v1078 = vunpack.c.h.b16 %v270
    %v1079 = vunpack.c.h.b16 %v271
    %v1080 = vpack.c.b16 %v1079, %v1078
    %1082 = vmatpush.bf16.msra.mxu0 0
    %1083 = vmatpush.bf16.msra.mxu0 0
    %1084 = vmatpush.bf16.msra.mxu0 0
    %1085 = vmatpush.bf16.msra.mxu0 0
    %1086 = vmatpush.bf16.msra.mxu0 0
    %1087 = vmatpush.bf16.msra.mxu0 %v713
    %1088 = vmatpush.bf16.msra.mxu0 %v1080
    %1089 = vmatpush.bf16.msra.mxu0 %v1076
    %1090 = vmatmul.bf16.gmra.mxu0 %v704
    %v1091 = vpop.f32.mrf.mxu0
    %v1092 = vadd.f32 0.0, %v1091
    %v1093 = vpop.f32.mrf.mxu0
    %v1094 = vadd.f32 0.0, %v1093
    %1095 = vmatmul.bf16.gmra.mxu0 %v707
    %v1096 = vpop.f32.mrf.mxu0
    %v1097 = vadd.f32 0.0, %v1096
    %v1098 = vpop.f32.mrf.mxu0
    %v1099 = vadd.f32 0.0, %v1098
    %1100 = vdwg.mxu0
    %1101 = vst [vmem:[#allocation5 + $0x8] sm:$0xff] %v1092
    %1102 = vst [vmem:[#allocation5 + $0x18] sm:$0xff] %v1094
    %1103 = vst [vmem:[#allocation5 + $0x28] sm:$0xff] %v1097
    %1104 = vst [vmem:[#allocation5 + $0x38] sm:$0xff] %v1099
    %s1105 = scalar_lea.vmem [#allocation2], 64
    %v1106 = vld [vmem:[%s1105] sm:$0xff]
    %v1107 = vld [vmem:[%s1105 + $0x8] sm:$0xff]
    %v1108 = vld [vmem:[%s1105 + $0x10] sm:$0xff]
    %v1109 = vld [vmem:[%s1105 + $0x18] sm:$0xff]
    %v1110 = vld [vmem:[%s1105 + $0x20] sm:$0xff]
    %v1111 = vld [vmem:[%s1105 + $0x28] sm:$0xff]
    %v1112 = vld [vmem:[%s1105 + $0x30] sm:$0xff]
    %v1113 = vld [vmem:[%s1105 + $0x38] sm:$0xff]
    %v1114 = vadd.f32 %v1106, %v1107
    %v1115 = vadd.f32 %v1114, %v1108
    %v1116 = vadd.f32 %v1115, %v1109
    %1117 = vadd.xlane.f32.xlu0 %v1116
    %v1118 = vpop.xlane.xlu0 %1117
    %v1119 = vrot.slane %v1118, 4
    %v1120 = vadd.f32 %v1118, %v1119
    %v1121 = vrot.slane %v1120, 2
    %v1122 = vadd.f32 %v1120, %v1121
    %v1123 = vrot.slane %v1122, 1
    %v1124 = vadd.f32 %v1122, %v1123
    %s1125 = vtos %v1124
    %v1126 = vrcp.pop 4096.0
    %v1127 = vmul.f32 4096.0, %v1126
    %v1128 = vsub.f32 1.0, %v1127
    %v1129 = vmul.f32 %v1126, %v1128
    %v1130 = vadd.f32 %v1126, %v1129
    %vm1131 = vweird.f32 %v1126
    %v1132 = vsel %vm1131, %v1126, %v1130
    %s1133 = vtos %v1132
    %s1134 = smul.f32 %s1125, %s1133
    %v1135 = vmul.f32 %v1106, %v1106
    %v1136 = vmul.f32 %v1107, %v1107
    %v1137 = vmul.f32 %v1108, %v1108
    %v1138 = vmul.f32 %v1109, %v1109
    %v1139 = vadd.f32 %v1135, %v1136
    %v1140 = vadd.f32 %v1139, %v1137
    %v1141 = vadd.f32 %v1140, %v1138
    %1142 = vadd.xlane.f32.xlu0 %v1141
    %v1143 = vpop.xlane.xlu0 %1142
    %v1144 = vrot.slane %v1143, 4
    %v1145 = vadd.f32 %v1143, %v1144
    %v1146 = vrot.slane %v1145, 2
    %v1147 = vadd.f32 %v1145, %v1146
    %v1148 = vrot.slane %v1147, 1
    %v1149 = vadd.f32 %v1147, %v1148
    %s1150 = vtos %v1149
    %v1151 = vrcp.pop 4096.0
    %v1152 = vmul.f32 4096.0, %v1151
    %v1153 = vsub.f32 1.0, %v1152
    %v1154 = vmul.f32 %v1151, %v1153
    %v1155 = vadd.f32 %v1151, %v1154
    %vm1156 = vweird.f32 %v1151
    %v1157 = vsel %vm1156, %v1151, %v1155
    %s1158 = vtos %v1157
    %s1159 = smul.f32 %s1150, %s1158
    %s1160 = smul.f32 %s1134, %s1134
    %s1161 = ssub.f32 %s1159, %s1160
    %s1162 = smax.f32 %s1161, 0.0
    %v1163 = vstv %s1134
    %v1164 = vsub.f32 %v1106, %v1163
    %v1165 = vsub.f32 %v1107, %v1163
    %v1166 = vsub.f32 %v1108, %v1163
    %v1167 = vsub.f32 %v1109, %v1163
    %s1168 = sadd.f32 %s1162, 1e-05
    %v1169 = vstv %s1168
    %v1170 = vrsqrt.pop %v1169
    %v1171 = vmul.f32 %v1170, %v1169
    %v1172 = vmul.f32 %v1171, %v1170
    %v1173 = vmul.f32 0.5, %v1172
    %v1174 = vsub.f32 1.5, %v1173
    %v1175 = vmul.f32 %v1170, %v1174
    %vm1176 = vweird.f32 %v1169
    %vm1177 = vweird.f32 %v1170
    %vm1178 = vmor %vm1176, %vm1177
    %v1179 = vsel %vm1178, %v1170, %v1175
    %s1180 = vtos %v1179
    %v1181 = vstv %s1180
    %v1182 = vmul.f32 %v1164, %v1181
    %v1183 = vmul.f32 %v1165, %v1181
    %v1184 = vmul.f32 %v1166, %v1181
    %v1185 = vmul.f32 %v1167, %v1181
    %v1186 = vpack.c.bf16 %v1184, %v1182
    %v1187 = vpack.c.bf16 %v1185, %v1183
    %1188 = vmatpush.bf16.msra.mxu0 0
    %1189 = vmatpush.bf16.msra.mxu0 0
    %1190 = vmatpush.bf16.msra.mxu0 0
    %1191 = vmatpush.bf16.msra.mxu0 0
    %1192 = vmatpush.bf16.msra.mxu0 0
    %1193 = vmatpush.bf16.msra.mxu0 0
    %1194 = vmatpush.bf16.msra.mxu0 0
    %1195 = vmatpush.bf16.msra.mxu0 %v1186
    %1196 = vmatmul.bf16.gmra.mxu0 %v191
    %v1197 = vpop.f32.mrf.mxu0
    %v1198 = vadd.f32 %v139, %v1197
    %v1199 = vpop.f32.mrf.mxu0
    %v1200 = vadd.f32 %v144, %v1199
    %1201 = vmatmul.bf16.gmra.mxu0 %v194
    %v1202 = vpop.f32.mrf.mxu0
    %v1203 = vadd.f32 %v149, %v1202
    %v1204 = vpop.f32.mrf.mxu0
    %v1205 = vadd.f32 %v154, %v1204
    %1206 = vmatmul.bf16.gmra.mxu0 %v197
    %v1207 = vpop.f32.mrf.mxu0
    %v1208 = vadd.f32 %v159, %v1207
    %v1209 = vpop.f32.mrf.mxu0
    %v1210 = vadd.f32 %v164, %v1209
    %1211 = vmatmul.bf16.gmra.mxu0 %v200
    %v1212 = vpop.f32.mrf.mxu0
    %v1213 = vadd.f32 %v169, %v1212
    %v1214 = vpop.f32.mrf.mxu0
    %1215 = vdwg.mxu0
    %1216 = vmatpush.bf16.msra.mxu0 0
    %1217 = vmatpush.bf16.msra.mxu0 0
    %1218 = vmatpush.bf16.msra.mxu0 0
    %1219 = vmatpush.bf16.msra.mxu0 0
    %1220 = vmatpush.bf16.msra.mxu0 0
    %1221 = vmatpush.bf16.msra.mxu0 0
    %1222 = vmatpush.bf16.msra.mxu0 0
    %1223 = vmatpush.bf16.msra.mxu0 %v1187
    %1224 = vmatmul.bf16.gmra.mxu0 %v191
    %v1225 = vpop.f32.mrf.mxu0
    %v1226 = vadd.f32 %v139, %v1225
    %v1227 = vpop.f32.mrf.mxu0
    %v1228 = vadd.f32 %v144, %v1227
    %1229 = vmatmul.bf16.gmra.mxu0 %v194
    %v1230 = vpop.f32.mrf.mxu0
    %v1231 = vadd.f32 %v149, %v1230
    %v1232 = vpop.f32.mrf.mxu0
    %v1233 = vadd.f32 %v154, %v1232
    %1234 = vmatmul.bf16.gmra.mxu0 %v197
    %v1235 = vpop.f32.mrf.mxu0
    %v1236 = vadd.f32 %v159, %v1235
    %v1237 = vpop.f32.mrf.mxu0
    %v1238 = vadd.f32 %v164, %v1237
    %1239 = vmatmul.bf16.gmra.mxu0 %v200
    %v1240 = vpop.f32.mrf.mxu0
    %v1241 = vadd.f32 %v169, %v1240
    %v1242 = vpop.f32.mrf.mxu0
    %1243 = vdwg.mxu0
    %v1244 = vpack.c.bf16 %v1226, %v1198
    %v1245 = vpack.c.bf16 %v1228, %v1200
    %v1246 = vpack.c.bf16 %v1205, %v1203
    %v1247 = vpack.c.bf16 %v1233, %v1231
    %v1248 = vpack.c.bf16 %v1210, %v1208
    %v1249 = vpack.c.bf16 %v1238, %v1236
    %v1250 = vpack.c.bf16 %v1213, %v1213
    %v1251 = vpack.c.bf16 %v1241, %v1241
    %v1252 = vmax.f32 %v1110, 0.0
    %v1253 = vmax.f32 %v1111, 0.0
    %v1254 = vmax.f32 %v1112, 0.0
    %v1255 = vmax.f32 %v1113, 0.0
    %v1256 = vpack.c.bf16 %v1253, %v1252
    %v1257 = vpack.c.bf16 %v1255, %v1254
    %1258 = vxpose.binary.xlu0.c.b16.start [1/16] %v1247, %v1246, 128
    %1259 = vxpose.binary.xlu0.c.b16.cont [2/16] 0, 0, 128
    %1260 = vxpose.binary.xlu0.c.b16.cont [3/16] 0, 0, 128
    %1261 = vxpose.binary.xlu0.c.b16.cont [4/16] 0, 0, 128
    %1262 = vxpose.binary.xlu0.c.b16.cont [5/16] 0, 0, 128
    %1263 = vxpose.binary.xlu0.c.b16.cont [6/16] 0, 0, 128
    %1264 = vxpose.binary.xlu0.c.b16.cont [7/16] 0, 0, 128
    %1265 = vxpose.binary.xlu0.c.b16.end [8/16] 0, 0, 128
    %v1266 = vpop.trf.xlu0
    %v1267 = vpop.trf.xlu0
    %v1268 = vpop.trf.xlu0
    %v1269 = vpop.trf.xlu0
    %v1270 = vpop.trf.xlu0
    %v1271 = vpop.trf.xlu0
    %v1272 = vpop.trf.xlu0
    %v1273 = vpop.trf.xlu0
    %v1274 = vpop.trf.xlu0
    %v1275 = vpop.trf.xlu0
    %v1276 = vpop.trf.xlu0
    %v1277 = vpop.trf.xlu0
    %v1278 = vpop.trf.xlu0
    %v1279 = vpop.trf.xlu0
    %v1280 = vpop.trf.xlu0
    %v1281 = vpop.trf.xlu0
    %v1284 = vunpack.c.l.b16 %v1244
    %v1285 = vunpack.c.l.b16 %v1245
    %v1286 = vpack.c.b16 %v1285, %v1284
    %v1289 = vsel %vm189, %v1266, 0
    %v1292 = vsel %vm189, %v1268, 0
    %v1295 = vsel %vm189, %v1270, 0
    %v1298 = vsel %vm189, %v1272, 0
    %v1301 = vsel %vm189, %v1274, 0
    %v1304 = vsel %vm189, %v1276, 0
    %v1307 = vsel %vm189, %v1278, 0
    %v1310 = vsel %vm189, %v1280, 0
    %v1313 = vsel %vm189, %v1267, 0
    %v1316 = vsel %vm189, %v1269, 0
    %v1319 = vsel %vm189, %v1271, 0
    %v1322 = vsel %vm189, %v1273, 0
    %v1325 = vsel %vm189, %v1275, 0
    %v1328 = vsel %vm189, %v1277, 0
    %v1331 = vsel %vm189, %v1279, 0
    %v1334 = vsel %vm189, %v1281, 0
    %1336 = vmatpush.bf16.msra.mxu0 0
    %1337 = vmatpush.bf16.msra.mxu0 0
    %1338 = vmatpush.bf16.msra.mxu0 0
    %1339 = vmatpush.bf16.msra.mxu0 0
    %1340 = vmatpush.bf16.msra.mxu0 0
    %1341 = vmatpush.bf16.msra.mxu0 0
    %1342 = vmatpush.bf16.msra.mxu0 0
    %1343 = vmatpush.bf16.msra.mxu0 %v1286
    %1344 = vmatmul.bf16.gmra.mxu0 %v1289
    %v1345 = vpop.f32.mrf.mxu0
    %v1346 = vadd.f32 0.0, %v1345
    %v1347 = vpop.f32.mrf.mxu0
    %v1348 = vadd.f32 0.0, %v1347
    %1349 = vmatmul.bf16.gmra.mxu0 %v1292
    %v1350 = vpop.f32.mrf.mxu0
    %v1351 = vadd.f32 0.0, %v1350
    %v1352 = vpop.f32.mrf.mxu0
    %v1353 = vadd.f32 0.0, %v1352
    %1354 = vmatmul.bf16.gmra.mxu0 %v1295
    %v1355 = vpop.f32.mrf.mxu0
    %v1356 = vadd.f32 0.0, %v1355
    %v1357 = vpop.f32.mrf.mxu0
    %v1358 = vadd.f32 0.0, %v1357
    %1359 = vmatmul.bf16.gmra.mxu0 %v1298
    %v1360 = vpop.f32.mrf.mxu0
    %v1361 = vadd.f32 0.0, %v1360
    %v1362 = vpop.f32.mrf.mxu0
    %v1363 = vadd.f32 0.0, %v1362
    %1364 = vmatmul.bf16.gmra.mxu0 %v1301
    %v1365 = vpop.f32.mrf.mxu0
    %v1366 = vadd.f32 0.0, %v1365
    %v1367 = vpop.f32.mrf.mxu0
    %v1368 = vadd.f32 0.0, %v1367
    %1369 = vmatmul.bf16.gmra.mxu0 %v1304
    %v1370 = vpop.f32.mrf.mxu0
    %v1371 = vadd.f32 0.0, %v1370
    %v1372 = vpop.f32.mrf.mxu0
    %v1373 = vadd.f32 0.0, %v1372
    %1374 = vmatmul.bf16.gmra.mxu0 %v1307
    %v1375 = vpop.f32.mrf.mxu0
    %v1376 = vadd.f32 0.0, %v1375
    %v1377 = vpop.f32.mrf.mxu0
    %v1378 = vadd.f32 0.0, %v1377
    %1379 = vmatmul.bf16.gmra.mxu0 %v1310
    %v1380 = vpop.f32.mrf.mxu0
    %v1381 = vadd.f32 0.0, %v1380
    %v1382 = vpop.f32.mrf.mxu0
    %v1383 = vadd.f32 0.0, %v1382
    %1384 = vmatmul.bf16.gmra.mxu0 %v1313
    %v1385 = vpop.f32.mrf.mxu0
    %v1386 = vadd.f32 0.0, %v1385
    %v1387 = vpop.f32.mrf.mxu0
    %v1388 = vadd.f32 0.0, %v1387
    %1389 = vmatmul.bf16.gmra.mxu0 %v1316
    %v1390 = vpop.f32.mrf.mxu0
    %v1391 = vadd.f32 0.0, %v1390
    %v1392 = vpop.f32.mrf.mxu0
    %v1393 = vadd.f32 0.0, %v1392
    %1394 = vmatmul.bf16.gmra.mxu0 %v1319
    %v1395 = vpop.f32.mrf.mxu0
    %v1396 = vadd.f32 0.0, %v1395
    %v1397 = vpop.f32.mrf.mxu0
    %v1398 = vadd.f32 0.0, %v1397
    %1399 = vmatmul.bf16.gmra.mxu0 %v1322
    %v1400 = vpop.f32.mrf.mxu0
    %v1401 = vadd.f32 0.0, %v1400
    %v1402 = vpop.f32.mrf.mxu0
    %v1403 = vadd.f32 0.0, %v1402
    %1404 = vmatmul.bf16.gmra.mxu0 %v1325
    %v1405 = vpop.f32.mrf.mxu0
    %v1406 = vadd.f32 0.0, %v1405
    %v1407 = vpop.f32.mrf.mxu0
    %v1408 = vadd.f32 0.0, %v1407
    %1409 = vmatmul.bf16.gmra.mxu0 %v1328
    %v1410 = vpop.f32.mrf.mxu0
    %v1411 = vadd.f32 0.0, %v1410
    %v1412 = vpop.f32.mrf.mxu0
    %v1413 = vadd.f32 0.0, %v1412
    %1414 = vmatmul.bf16.gmra.mxu0 %v1331
    %v1415 = vpop.f32.mrf.mxu0
    %v1416 = vadd.f32 0.0, %v1415
    %v1417 = vpop.f32.mrf.mxu0
    %v1418 = vadd.f32 0.0, %v1417
    %1419 = vmatmul.bf16.gmra.mxu0 %v1334
    %v1420 = vpop.f32.mrf.mxu0
    %v1421 = vadd.f32 0.0, %v1420
    %v1422 = vpop.f32.mrf.mxu0
    %v1423 = vadd.f32 0.0, %v1422
    %1424 = vdwg.mxu0
    %v1425 = vmax.f32 %v1346, %v1356
    %v1426 = vmax.f32 %v1348, %v1358
    %v1427 = vmax.f32 %v1351, %v1361
    %v1428 = vmax.f32 %v1353, %v1363
    %v1429 = vmax.f32 %v1425, %v1366
    %v1430 = vmax.f32 %v1426, %v1368
    %v1431 = vmax.f32 %v1427, %v1371
    %v1432 = vmax.f32 %v1428, %v1373
    %v1433 = vmax.f32 %v1429, %v1376
    %v1434 = vmax.f32 %v1430, %v1378
    %v1435 = vmax.f32 %v1431, %v1381
    %v1436 = vmax.f32 %v1432, %v1383
    %v1437 = vmax.f32 %v1433, %v1386
    %v1438 = vmax.f32 %v1434, %v1388
    %v1439 = vmax.f32 %v1435, %v1391
    %v1440 = vmax.f32 %v1436, %v1393
    %v1441 = vmax.f32 %v1437, %v1396
    %v1442 = vmax.f32 %v1438, %v1398
    %v1443 = vmax.f32 %v1439, %v1401
    %v1444 = vmax.f32 %v1440, %v1403
    %v1445 = vmax.f32 %v1441, %v1406
    %v1446 = vmax.f32 %v1442, %v1408
    %v1447 = vmax.f32 %v1443, %v1411
    %v1448 = vmax.f32 %v1444, %v1413
    %v1449 = vmax.f32 %v1445, %v1416
    %v1450 = vmax.f32 %v1446, %v1418
    %v1451 = vmax.f32 %v1447, %v1421
    %v1452 = vmax.f32 %v1448, %v1423
    %v1453 = vmax.f32 %v1449, %v1450
    %v1454 = vmax.f32 %v1451, %v1452
    %v1455 = vmax.f32 %v1453, %v1454
    %v1456 = vrot.slane %v1455, 4
    %v1457 = vmax.f32 %v1455, %v1456
    %v1458 = vrot.slane %v1457, 2
    %v1459 = vmax.f32 %v1457, %v1458
    %v1460 = vrot.slane %v1459, 1
    %v1461 = vmax.f32 %v1459, %v1460
    %v1462 = vsub.f32 %v1346, %v1461
    %v1463 = vsub.f32 %v1348, %v1461
    %v1464 = vsub.f32 %v1351, %v1461
    %v1465 = vsub.f32 %v1353, %v1461
    %v1466 = vsub.f32 %v1356, %v1461
    %v1467 = vsub.f32 %v1358, %v1461
    %v1468 = vsub.f32 %v1361, %v1461
    %v1469 = vsub.f32 %v1363, %v1461
    %v1470 = vsub.f32 %v1366, %v1461
    %v1471 = vsub.f32 %v1368, %v1461
    %v1472 = vsub.f32 %v1371, %v1461
    %v1473 = vsub.f32 %v1373, %v1461
    %v1474 = vsub.f32 %v1376, %v1461
    %v1475 = vsub.f32 %v1378, %v1461
    %v1476 = vsub.f32 %v1381, %v1461
    %v1477 = vsub.f32 %v1383, %v1461
    %v1478 = vsub.f32 %v1386, %v1461
    %v1479 = vsub.f32 %v1388, %v1461
    %v1480 = vsub.f32 %v1391, %v1461
    %v1481 = vsub.f32 %v1393, %v1461
    %v1482 = vsub.f32 %v1396, %v1461
    %v1483 = vsub.f32 %v1398, %v1461
    %v1484 = vsub.f32 %v1401, %v1461
    %v1485 = vsub.f32 %v1403, %v1461
    %v1486 = vsub.f32 %v1406, %v1461
    %v1487 = vsub.f32 %v1408, %v1461
    %v1488 = vsub.f32 %v1411, %v1461
    %v1489 = vsub.f32 %v1413, %v1461
    %v1490 = vsub.f32 %v1416, %v1461
    %v1491 = vsub.f32 %v1418, %v1461
    %v1492 = vsub.f32 %v1421, %v1461
    %v1493 = vsub.f32 %v1423, %v1461
    %v1494 = vpack.c.bf16 %v1463, %v1462
    %v1495 = vpack.c.bf16 %v1465, %v1464
    %v1496 = vpack.c.bf16 %v1467, %v1466
    %v1497 = vpack.c.bf16 %v1469, %v1468
    %v1498 = vpack.c.bf16 %v1471, %v1470
    %v1499 = vpack.c.bf16 %v1473, %v1472
    %v1500 = vpack.c.bf16 %v1475, %v1474
    %v1501 = vpack.c.bf16 %v1477, %v1476
    %v1502 = vpack.c.bf16 %v1479, %v1478
    %v1503 = vpack.c.bf16 %v1481, %v1480
    %v1504 = vpack.c.bf16 %v1483, %v1482
    %v1505 = vpack.c.bf16 %v1485, %v1484
    %v1506 = vpack.c.bf16 %v1487, %v1486
    %v1507 = vpack.c.bf16 %v1489, %v1488
    %v1508 = vpack.c.bf16 %v1491, %v1490
    %v1509 = vpack.c.bf16 %v1493, %v1492
    %v1510 = vunpack.c.l.bf16 %v1494
    %v1511 = vunpack.c.h.bf16 %v1494
    %v1512 = vunpack.c.l.bf16 %v1495
    %v1513 = vunpack.c.h.bf16 %v1495
    %v1514 = vunpack.c.l.bf16 %v1496
    %v1515 = vunpack.c.h.bf16 %v1496
    %v1516 = vunpack.c.l.bf16 %v1497
    %v1517 = vunpack.c.h.bf16 %v1497
    %v1518 = vunpack.c.l.bf16 %v1498
    %v1519 = vunpack.c.h.bf16 %v1498
    %v1520 = vunpack.c.l.bf16 %v1499
    %v1521 = vunpack.c.h.bf16 %v1499
    %v1522 = vunpack.c.l.bf16 %v1500
    %v1523 = vunpack.c.h.bf16 %v1500
    %v1524 = vunpack.c.l.bf16 %v1501
    %v1525 = vunpack.c.h.bf16 %v1501
    %v1526 = vunpack.c.l.bf16 %v1502
    %v1527 = vunpack.c.h.bf16 %v1502
    %v1528 = vunpack.c.l.bf16 %v1503
    %v1529 = vunpack.c.h.bf16 %v1503
    %v1530 = vunpack.c.l.bf16 %v1504
    %v1531 = vunpack.c.h.bf16 %v1504
    %v1532 = vunpack.c.l.bf16 %v1505
    %v1533 = vunpack.c.h.bf16 %v1505
    %v1534 = vunpack.c.l.bf16 %v1506
    %v1535 = vunpack.c.h.bf16 %v1506
    %v1536 = vunpack.c.l.bf16 %v1507
    %v1537 = vunpack.c.h.bf16 %v1507
    %v1538 = vunpack.c.l.bf16 %v1508
    %v1539 = vunpack.c.h.bf16 %v1508
    %v1540 = vunpack.c.l.bf16 %v1509
    %v1541 = vunpack.c.h.bf16 %v1509
    %v1542 = vmul.f32 %v1510, 1.442695
    %v1543 = vpow.pop %v1542
    %v1544 = vmul.f32 %v1511, 1.442695
    %v1545 = vpow.pop %v1544
    %v1546 = vmul.f32 %v1512, 1.442695
    %v1547 = vpow.pop %v1546
    %v1548 = vmul.f32 %v1513, 1.442695
    %v1549 = vpow.pop %v1548
    %v1550 = vmul.f32 %v1514, 1.442695
    %v1551 = vpow.pop %v1550
    %v1552 = vmul.f32 %v1515, 1.442695
    %v1553 = vpow.pop %v1552
    %v1554 = vmul.f32 %v1516, 1.442695
    %v1555 = vpow.pop %v1554
    %v1556 = vmul.f32 %v1517, 1.442695
    %v1557 = vpow.pop %v1556
    %v1558 = vmul.f32 %v1518, 1.442695
    %v1559 = vpow.pop %v1558
    %v1560 = vmul.f32 %v1519, 1.442695
    %v1561 = vpow.pop %v1560
    %v1562 = vmul.f32 %v1520, 1.442695
    %v1563 = vpow.pop %v1562
    %v1564 = vmul.f32 %v1521, 1.442695
    %v1565 = vpow.pop %v1564
    %v1566 = vmul.f32 %v1522, 1.442695
    %v1567 = vpow.pop %v1566
    %v1568 = vmul.f32 %v1523, 1.442695
    %v1569 = vpow.pop %v1568
    %v1570 = vmul.f32 %v1524, 1.442695
    %v1571 = vpow.pop %v1570
    %v1572 = vmul.f32 %v1525, 1.442695
    %v1573 = vpow.pop %v1572
    %v1574 = vmul.f32 %v1526, 1.442695
    %v1575 = vpow.pop %v1574
    %v1576 = vmul.f32 %v1527, 1.442695
    %v1577 = vpow.pop %v1576
    %v1578 = vmul.f32 %v1528, 1.442695
    %v1579 = vpow.pop %v1578
    %v1580 = vmul.f32 %v1529, 1.442695
    %v1581 = vpow.pop %v1580
    %v1582 = vmul.f32 %v1530, 1.442695
    %v1583 = vpow.pop %v1582
    %v1584 = vmul.f32 %v1531, 1.442695
    %v1585 = vpow.pop %v1584
    %v1586 = vmul.f32 %v1532, 1.442695
    %v1587 = vpow.pop %v1586
    %v1588 = vmul.f32 %v1533, 1.442695
    %v1589 = vpow.pop %v1588
    %v1590 = vmul.f32 %v1534, 1.442695
    %v1591 = vpow.pop %v1590
    %v1592 = vmul.f32 %v1535, 1.442695
    %v1593 = vpow.pop %v1592
    %v1594 = vmul.f32 %v1536, 1.442695
    %v1595 = vpow.pop %v1594
    %v1596 = vmul.f32 %v1537, 1.442695
    %v1597 = vpow.pop %v1596
    %v1598 = vmul.f32 %v1538, 1.442695
    %v1599 = vpow.pop %v1598
    %v1600 = vmul.f32 %v1539, 1.442695
    %v1601 = vpow.pop %v1600
    %v1602 = vmul.f32 %v1540, 1.442695
    %v1603 = vpow.pop %v1602
    %v1604 = vmul.f32 %v1541, 1.442695
    %v1605 = vpow.pop %v1604
    %v1606 = vpack.c.bf16 %v1545, %v1543
    %v1607 = vpack.c.bf16 %v1549, %v1547
    %v1608 = vpack.c.bf16 %v1553, %v1551
    %v1609 = vpack.c.bf16 %v1557, %v1555
    %v1610 = vpack.c.bf16 %v1561, %v1559
    %v1611 = vpack.c.bf16 %v1565, %v1563
    %v1612 = vpack.c.bf16 %v1569, %v1567
    %v1613 = vpack.c.bf16 %v1573, %v1571
    %v1614 = vpack.c.bf16 %v1577, %v1575
    %v1615 = vpack.c.bf16 %v1581, %v1579
    %v1616 = vpack.c.bf16 %v1585, %v1583
    %v1617 = vpack.c.bf16 %v1589, %v1587
    %v1618 = vpack.c.bf16 %v1593, %v1591
    %v1619 = vpack.c.bf16 %v1597, %v1595
    %v1620 = vpack.c.bf16 %v1601, %v1599
    %v1621 = vpack.c.bf16 %v1605, %v1603
    %1622 = vmatpush.bf16.msra.mxu0 %v1613
    %1623 = vmatpush.bf16.msra.mxu0 %v1612
    %1624 = vmatpush.bf16.msra.mxu0 %v1611
    %1625 = vmatpush.bf16.msra.mxu0 %v1610
    %1626 = vmatpush.bf16.msra.mxu0 %v1609
    %1627 = vmatpush.bf16.msra.mxu0 %v1608
    %1628 = vmatpush.bf16.msra.mxu0 %v1607
    %1629 = vmatpush.bf16.msra.mxu0 %v1606
    %1630 = vmatmul.bf16.gmra.mxu0 %v1248
    %v1631 = vpop.f32.mrf.mxu0
    %v1632 = vadd.f32 0.0, %v1631
    %v1633 = vpop.f32.mrf.mxu0
    %v1634 = vadd.f32 0.0, %v1633
    %1635 = vmatmul.bf16.gmra.mxu0 %v1250
    %v1636 = vpop.f32.mrf.mxu0
    %v1637 = vadd.f32 0.0, %v1636
    %v1638 = vpop.f32.mrf.mxu0
    %1639 = vdwg.mxu0
    %1640 = vmatpush.bf16.msra.mxu0 %v1621
    %1641 = vmatpush.bf16.msra.mxu0 %v1620
    %1642 = vmatpush.bf16.msra.mxu0 %v1619
    %1643 = vmatpush.bf16.msra.mxu0 %v1618
    %1644 = vmatpush.bf16.msra.mxu0 %v1617
    %1645 = vmatpush.bf16.msra.mxu0 %v1616
    %1646 = vmatpush.bf16.msra.mxu0 %v1615
    %1647 = vmatpush.bf16.msra.mxu0 %v1614
    %1648 = vmatmul.bf16.gmra.mxu0 %v1249
    %v1649 = vpop.f32.mrf.mxu0
    %v1650 = vadd.f32 %v1632, %v1649
    %v1651 = vpop.f32.mrf.mxu0
    %v1652 = vadd.f32 %v1634, %v1651
    %1653 = vmatmul.bf16.gmra.mxu0 %v1251
    %v1654 = vpop.f32.mrf.mxu0
    %v1655 = vadd.f32 %v1637, %v1654
    %v1656 = vpop.f32.mrf.mxu0
    %1657 = vdwg.mxu0
    %v1658 = vrcp.pop %v1655
    %v1659 = vperm.slane %v1658, 0
    %v1660 = vmul.f32 %v1650, %v1659
    %v1661 = vmul.f32 %v1652, %v1659
    %v1662 = vmax.f32 %v1660, 0.0
    %v1663 = vmax.f32 %v1661, 0.0
    %v1664 = vpack.c.bf16 %v1662, %v1662
    %v1665 = vpack.c.bf16 %v1663, %v1663
    %v1668 = vunpack.c.l.b16 %v1664
    %v1669 = vunpack.c.l.b16 %v1665
    %v1670 = vpack.c.b16 %v1669, %v1668
    %v1674 = vunpack.c.l.b16 %v1256
    %v1675 = vunpack.c.l.b16 %v1257
    %v1676 = vpack.c.b16 %v1675, %v1674
    %1678 = vmatpush.bf16.msra.mxu0 0
    %1679 = vmatpush.bf16.msra.mxu0 0
    %1680 = vmatpush.bf16.msra.mxu0 0
    %1681 = vmatpush.bf16.msra.mxu0 0
    %1682 = vmatpush.bf16.msra.mxu0 0
    %1683 = vmatpush.bf16.msra.mxu0 %v713
    %1684 = vmatpush.bf16.msra.mxu0 %v1676
    %1685 = vmatpush.bf16.msra.mxu0 %v1670
    %1686 = vmatmul.bf16.gmra.mxu0 %v704
    %v1687 = vpop.f32.mrf.mxu0
    %v1688 = vadd.f32 0.0, %v1687
    %v1689 = vpop.f32.mrf.mxu0
    %v1690 = vadd.f32 0.0, %v1689
    %1691 = vmatmul.bf16.gmra.mxu0 %v707
    %v1692 = vpop.f32.mrf.mxu0
    %v1693 = vadd.f32 0.0, %v1692
    %v1694 = vpop.f32.mrf.mxu0
    %v1695 = vadd.f32 0.0, %v1694
    %1696 = vdwg.mxu0
    %s1697 = scalar_lea.vmem [#allocation5], 64
    %1698 = vst [vmem:[%s1697] sm:$0xff] %v1688
    %1699 = vst [vmem:[%s1697 + $0x10] sm:$0xff] %v1690
    %1700 = vst [vmem:[%s1697 + $0x20] sm:$0xff] %v1693
    %1701 = vst [vmem:[%s1697 + $0x30] sm:$0xff] %v1695
    %v1702 = vunpack.c.h.b16 %v1244
    %v1703 = vunpack.c.h.b16 %v1245
    %v1704 = vpack.c.b16 %v1703, %v1702
    %1706 = vmatpush.bf16.msra.mxu0 0
    %1707 = vmatpush.bf16.msra.mxu0 0
    %1708 = vmatpush.bf16.msra.mxu0 0
    %1709 = vmatpush.bf16.msra.mxu0 0
    %1710 = vmatpush.bf16.msra.mxu0 0
    %1711 = vmatpush.bf16.msra.mxu0 0
    %1712 = vmatpush.bf16.msra.mxu0 0
    %1713 = vmatpush.bf16.msra.mxu0 %v1704
    %1714 = vmatmul.bf16.gmra.mxu0 %v1289
    %v1715 = vpop.f32.mrf.mxu0
    %v1716 = vadd.f32 0.0, %v1715
    %v1717 = vpop.f32.mrf.mxu0
    %v1718 = vadd.f32 0.0, %v1717
    %1719 = vmatmul.bf16.gmra.mxu0 %v1292
    %v1720 = vpop.f32.mrf.mxu0
    %v1721 = vadd.f32 0.0, %v1720
    %v1722 = vpop.f32.mrf.mxu0
    %v1723 = vadd.f32 0.0, %v1722
    %1724 = vmatmul.bf16.gmra.mxu0 %v1295
    %v1725 = vpop.f32.mrf.mxu0
    %v1726 = vadd.f32 0.0, %v1725
    %v1727 = vpop.f32.mrf.mxu0
    %v1728 = vadd.f32 0.0, %v1727
    %1729 = vmatmul.bf16.gmra.mxu0 %v1298
    %v1730 = vpop.f32.mrf.mxu0
    %v1731 = vadd.f32 0.0, %v1730
    %v1732 = vpop.f32.mrf.mxu0
    %v1733 = vadd.f32 0.0, %v1732
    %1734 = vmatmul.bf16.gmra.mxu0 %v1301
    %v1735 = vpop.f32.mrf.mxu0
    %v1736 = vadd.f32 0.0, %v1735
    %v1737 = vpop.f32.mrf.mxu0
    %v1738 = vadd.f32 0.0, %v1737
    %1739 = vmatmul.bf16.gmra.mxu0 %v1304
    %v1740 = vpop.f32.mrf.mxu0
    %v1741 = vadd.f32 0.0, %v1740
    %v1742 = vpop.f32.mrf.mxu0
    %v1743 = vadd.f32 0.0, %v1742
    %1744 = vmatmul.bf16.gmra.mxu0 %v1307
    %v1745 = vpop.f32.mrf.mxu0
    %v1746 = vadd.f32 0.0, %v1745
    %v1747 = vpop.f32.mrf.mxu0
    %v1748 = vadd.f32 0.0, %v1747
    %1749 = vmatmul.bf16.gmra.mxu0 %v1310
    %v1750 = vpop.f32.mrf.mxu0
    %v1751 = vadd.f32 0.0, %v1750
    %v1752 = vpop.f32.mrf.mxu0
    %v1753 = vadd.f32 0.0, %v1752
    %1754 = vmatmul.bf16.gmra.mxu0 %v1313
    %v1755 = vpop.f32.mrf.mxu0
    %v1756 = vadd.f32 0.0, %v1755
    %v1757 = vpop.f32.mrf.mxu0
    %v1758 = vadd.f32 0.0, %v1757
    %1759 = vmatmul.bf16.gmra.mxu0 %v1316
    %v1760 = vpop.f32.mrf.mxu0
    %v1761 = vadd.f32 0.0, %v1760
    %v1762 = vpop.f32.mrf.mxu0
    %v1763 = vadd.f32 0.0, %v1762
    %1764 = vmatmul.bf16.gmra.mxu0 %v1319
    %v1765 = vpop.f32.mrf.mxu0
    %v1766 = vadd.f32 0.0, %v1765
    %v1767 = vpop.f32.mrf.mxu0
    %v1768 = vadd.f32 0.0, %v1767
    %1769 = vmatmul.bf16.gmra.mxu0 %v1322
    %v1770 = vpop.f32.mrf.mxu0
    %v1771 = vadd.f32 0.0, %v1770
    %v1772 = vpop.f32.mrf.mxu0
    %v1773 = vadd.f32 0.0, %v1772
    %1774 = vmatmul.bf16.gmra.mxu0 %v1325
    %v1775 = vpop.f32.mrf.mxu0
    %v1776 = vadd.f32 0.0, %v1775
    %v1777 = vpop.f32.mrf.mxu0
    %v1778 = vadd.f32 0.0, %v1777
    %1779 = vmatmul.bf16.gmra.mxu0 %v1328
    %v1780 = vpop.f32.mrf.mxu0
    %v1781 = vadd.f32 0.0, %v1780
    %v1782 = vpop.f32.mrf.mxu0
    %v1783 = vadd.f32 0.0, %v1782
    %1784 = vmatmul.bf16.gmra.mxu0 %v1331
    %v1785 = vpop.f32.mrf.mxu0
    %v1786 = vadd.f32 0.0, %v1785
    %v1787 = vpop.f32.mrf.mxu0
    %v1788 = vadd.f32 0.0, %v1787
    %1789 = vmatmul.bf16.gmra.mxu0 %v1334
    %v1790 = vpop.f32.mrf.mxu0
    %v1791 = vadd.f32 0.0, %v1790
    %v1792 = vpop.f32.mrf.mxu0
    %v1793 = vadd.f32 0.0, %v1792
    %1794 = vdwg.mxu0
    %v1795 = vmax.f32 %v1716, %v1726
    %v1796 = vmax.f32 %v1718, %v1728
    %v1797 = vmax.f32 %v1721, %v1731
    %v1798 = vmax.f32 %v1723, %v1733
    %v1799 = vmax.f32 %v1795, %v1736
    %v1800 = vmax.f32 %v1796, %v1738
    %v1801 = vmax.f32 %v1797, %v1741
    %v1802 = vmax.f32 %v1798, %v1743
    %v1803 = vmax.f32 %v1799, %v1746
    %v1804 = vmax.f32 %v1800, %v1748
    %v1805 = vmax.f32 %v1801, %v1751
    %v1806 = vmax.f32 %v1802, %v1753
    %v1807 = vmax.f32 %v1803, %v1756
    %v1808 = vmax.f32 %v1804, %v1758
    %v1809 = vmax.f32 %v1805, %v1761
    %v1810 = vmax.f32 %v1806, %v1763
    %v1811 = vmax.f32 %v1807, %v1766
    %v1812 = vmax.f32 %v1808, %v1768
    %v1813 = vmax.f32 %v1809, %v1771
    %v1814 = vmax.f32 %v1810, %v1773
    %v1815 = vmax.f32 %v1811, %v1776
    %v1816 = vmax.f32 %v1812, %v1778
    %v1817 = vmax.f32 %v1813, %v1781
    %v1818 = vmax.f32 %v1814, %v1783
    %v1819 = vmax.f32 %v1815, %v1786
    %v1820 = vmax.f32 %v1816, %v1788
    %v1821 = vmax.f32 %v1817, %v1791
    %v1822 = vmax.f32 %v1818, %v1793
    %v1823 = vmax.f32 %v1819, %v1820
    %v1824 = vmax.f32 %v1821, %v1822
    %v1825 = vmax.f32 %v1823, %v1824
    %v1826 = vrot.slane %v1825, 4
    %v1827 = vmax.f32 %v1825, %v1826
    %v1828 = vrot.slane %v1827, 2
    %v1829 = vmax.f32 %v1827, %v1828
    %v1830 = vrot.slane %v1829, 1
    %v1831 = vmax.f32 %v1829, %v1830
    %v1832 = vsub.f32 %v1716, %v1831
    %v1833 = vsub.f32 %v1718, %v1831
    %v1834 = vsub.f32 %v1721, %v1831
    %v1835 = vsub.f32 %v1723, %v1831
    %v1836 = vsub.f32 %v1726, %v1831
    %v1837 = vsub.f32 %v1728, %v1831
    %v1838 = vsub.f32 %v1731, %v1831
    %v1839 = vsub.f32 %v1733, %v1831
    %v1840 = vsub.f32 %v1736, %v1831
    %v1841 = vsub.f32 %v1738, %v1831
    %v1842 = vsub.f32 %v1741, %v1831
    %v1843 = vsub.f32 %v1743, %v1831
    %v1844 = vsub.f32 %v1746, %v1831
    %v1845 = vsub.f32 %v1748, %v1831
    %v1846 = vsub.f32 %v1751, %v1831
    %v1847 = vsub.f32 %v1753, %v1831
    %v1848 = vsub.f32 %v1756, %v1831
    %v1849 = vsub.f32 %v1758, %v1831
    %v1850 = vsub.f32 %v1761, %v1831
    %v1851 = vsub.f32 %v1763, %v1831
    %v1852 = vsub.f32 %v1766, %v1831
    %v1853 = vsub.f32 %v1768, %v1831
    %v1854 = vsub.f32 %v1771, %v1831
    %v1855 = vsub.f32 %v1773, %v1831
    %v1856 = vsub.f32 %v1776, %v1831
    %v1857 = vsub.f32 %v1778, %v1831
    %v1858 = vsub.f32 %v1781, %v1831
    %v1859 = vsub.f32 %v1783, %v1831
    %v1860 = vsub.f32 %v1786, %v1831
    %v1861 = vsub.f32 %v1788, %v1831
    %v1862 = vsub.f32 %v1791, %v1831
    %v1863 = vsub.f32 %v1793, %v1831
    %v1864 = vpack.c.bf16 %v1833, %v1832
    %v1865 = vpack.c.bf16 %v1835, %v1834
    %v1866 = vpack.c.bf16 %v1837, %v1836
    %v1867 = vpack.c.bf16 %v1839, %v1838
    %v1868 = vpack.c.bf16 %v1841, %v1840
    %v1869 = vpack.c.bf16 %v1843, %v1842
    %v1870 = vpack.c.bf16 %v1845, %v1844
    %v1871 = vpack.c.bf16 %v1847, %v1846
    %v1872 = vpack.c.bf16 %v1849, %v1848
    %v1873 = vpack.c.bf16 %v1851, %v1850
    %v1874 = vpack.c.bf16 %v1853, %v1852
    %v1875 = vpack.c.bf16 %v1855, %v1854
    %v1876 = vpack.c.bf16 %v1857, %v1856
    %v1877 = vpack.c.bf16 %v1859, %v1858
    %v1878 = vpack.c.bf16 %v1861, %v1860
    %v1879 = vpack.c.bf16 %v1863, %v1862
    %v1880 = vunpack.c.l.bf16 %v1864
    %v1881 = vunpack.c.h.bf16 %v1864
    %v1882 = vunpack.c.l.bf16 %v1865
    %v1883 = vunpack.c.h.bf16 %v1865
    %v1884 = vunpack.c.l.bf16 %v1866
    %v1885 = vunpack.c.h.bf16 %v1866
    %v1886 = vunpack.c.l.bf16 %v1867
    %v1887 = vunpack.c.h.bf16 %v1867
    %v1888 = vunpack.c.l.bf16 %v1868
    %v1889 = vunpack.c.h.bf16 %v1868
    %v1890 = vunpack.c.l.bf16 %v1869
    %v1891 = vunpack.c.h.bf16 %v1869
    %v1892 = vunpack.c.l.bf16 %v1870
    %v1893 = vunpack.c.h.bf16 %v1870
    %v1894 = vunpack.c.l.bf16 %v1871
    %v1895 = vunpack.c.h.bf16 %v1871
    %v1896 = vunpack.c.l.bf16 %v1872
    %v1897 = vunpack.c.h.bf16 %v1872
    %v1898 = vunpack.c.l.bf16 %v1873
    %v1899 = vunpack.c.h.bf16 %v1873
    %v1900 = vunpack.c.l.bf16 %v1874
    %v1901 = vunpack.c.h.bf16 %v1874
    %v1902 = vunpack.c.l.bf16 %v1875
    %v1903 = vunpack.c.h.bf16 %v1875
    %v1904 = vunpack.c.l.bf16 %v1876
    %v1905 = vunpack.c.h.bf16 %v1876
    %v1906 = vunpack.c.l.bf16 %v1877
    %v1907 = vunpack.c.h.bf16 %v1877
    %v1908 = vunpack.c.l.bf16 %v1878
    %v1909 = vunpack.c.h.bf16 %v1878
    %v1910 = vunpack.c.l.bf16 %v1879
    %v1911 = vunpack.c.h.bf16 %v1879
    %v1912 = vmul.f32 %v1880, 1.442695
    %v1913 = vpow.pop %v1912
    %v1914 = vmul.f32 %v1881, 1.442695
    %v1915 = vpow.pop %v1914
    %v1916 = vmul.f32 %v1882, 1.442695
    %v1917 = vpow.pop %v1916
    %v1918 = vmul.f32 %v1883, 1.442695
    %v1919 = vpow.pop %v1918
    %v1920 = vmul.f32 %v1884, 1.442695
    %v1921 = vpow.pop %v1920
    %v1922 = vmul.f32 %v1885, 1.442695
    %v1923 = vpow.pop %v1922
    %v1924 = vmul.f32 %v1886, 1.442695
    %v1925 = vpow.pop %v1924
    %v1926 = vmul.f32 %v1887, 1.442695
    %v1927 = vpow.pop %v1926
    %v1928 = vmul.f32 %v1888, 1.442695
    %v1929 = vpow.pop %v1928
    %v1930 = vmul.f32 %v1889, 1.442695
    %v1931 = vpow.pop %v1930
    %v1932 = vmul.f32 %v1890, 1.442695
    %v1933 = vpow.pop %v1932
    %v1934 = vmul.f32 %v1891, 1.442695
    %v1935 = vpow.pop %v1934
    %v1936 = vmul.f32 %v1892, 1.442695
    %v1937 = vpow.pop %v1936
    %v1938 = vmul.f32 %v1893, 1.442695
    %v1939 = vpow.pop %v1938
    %v1940 = vmul.f32 %v1894, 1.442695
    %v1941 = vpow.pop %v1940
    %v1942 = vmul.f32 %v1895, 1.442695
    %v1943 = vpow.pop %v1942
    %v1944 = vmul.f32 %v1896, 1.442695
    %v1945 = vpow.pop %v1944
    %v1946 = vmul.f32 %v1897, 1.442695
    %v1947 = vpow.pop %v1946
    %v1948 = vmul.f32 %v1898, 1.442695
    %v1949 = vpow.pop %v1948
    %v1950 = vmul.f32 %v1899, 1.442695
    %v1951 = vpow.pop %v1950
    %v1952 = vmul.f32 %v1900, 1.442695
    %v1953 = vpow.pop %v1952
    %v1954 = vmul.f32 %v1901, 1.442695
    %v1955 = vpow.pop %v1954
    %v1956 = vmul.f32 %v1902, 1.442695
    %v1957 = vpow.pop %v1956
    %v1958 = vmul.f32 %v1903, 1.442695
    %v1959 = vpow.pop %v1958
    %v1960 = vmul.f32 %v1904, 1.442695
    %v1961 = vpow.pop %v1960
    %v1962 = vmul.f32 %v1905, 1.442695
    %v1963 = vpow.pop %v1962
    %v1964 = vmul.f32 %v1906, 1.442695
    %v1965 = vpow.pop %v1964
    %v1966 = vmul.f32 %v1907, 1.442695
    %v1967 = vpow.pop %v1966
    %v1968 = vmul.f32 %v1908, 1.442695
    %v1969 = vpow.pop %v1968
    %v1970 = vmul.f32 %v1909, 1.442695
    %v1971 = vpow.pop %v1970
    %v1972 = vmul.f32 %v1910, 1.442695
    %v1973 = vpow.pop %v1972
    %v1974 = vmul.f32 %v1911, 1.442695
    %v1975 = vpow.pop %v1974
    %v1976 = vpack.c.bf16 %v1915, %v1913
    %v1977 = vpack.c.bf16 %v1919, %v1917
    %v1978 = vpack.c.bf16 %v1923, %v1921
    %v1979 = vpack.c.bf16 %v1927, %v1925
    %v1980 = vpack.c.bf16 %v1931, %v1929
    %v1981 = vpack.c.bf16 %v1935, %v1933
    %v1982 = vpack.c.bf16 %v1939, %v1937
    %v1983 = vpack.c.bf16 %v1943, %v1941
    %v1984 = vpack.c.bf16 %v1947, %v1945
    %v1985 = vpack.c.bf16 %v1951, %v1949
    %v1986 = vpack.c.bf16 %v1955, %v1953
    %v1987 = vpack.c.bf16 %v1959, %v1957
    %v1988 = vpack.c.bf16 %v1963, %v1961
    %v1989 = vpack.c.bf16 %v1967, %v1965
    %v1990 = vpack.c.bf16 %v1971, %v1969
    %v1991 = vpack.c.bf16 %v1975, %v1973
    %1992 = vmatpush.bf16.msra.mxu0 %v1983
    %1993 = vmatpush.bf16.msra.mxu0 %v1982
    %1994 = vmatpush.bf16.msra.mxu0 %v1981
    %1995 = vmatpush.bf16.msra.mxu0 %v1980
    %1996 = vmatpush.bf16.msra.mxu0 %v1979
    %1997 = vmatpush.bf16.msra.mxu0 %v1978
    %1998 = vmatpush.bf16.msra.mxu0 %v1977
    %1999 = vmatpush.bf16.msra.mxu0 %v1976
    %2000 = vmatmul.bf16.gmra.mxu0 %v1248
    %v2001 = vpop.f32.mrf.mxu0
    %v2002 = vadd.f32 0.0, %v2001
    %v2003 = vpop.f32.mrf.mxu0
    %v2004 = vadd.f32 0.0, %v2003
    %2005 = vmatmul.bf16.gmra.mxu0 %v1250
    %v2006 = vpop.f32.mrf.mxu0
    %v2007 = vadd.f32 0.0, %v2006
    %v2008 = vpop.f32.mrf.mxu0
    %2009 = vdwg.mxu0
    %2010 = vmatpush.bf16.msra.mxu0 %v1991
    %2011 = vmatpush.bf16.msra.mxu0 %v1990
    %2012 = vmatpush.bf16.msra.mxu0 %v1989
    %2013 = vmatpush.bf16.msra.mxu0 %v1988
    %2014 = vmatpush.bf16.msra.mxu0 %v1987
    %2015 = vmatpush.bf16.msra.mxu0 %v1986
    %2016 = vmatpush.bf16.msra.mxu0 %v1985
    %2017 = vmatpush.bf16.msra.mxu0 %v1984
    %2018 = vmatmul.bf16.gmra.mxu0 %v1249
    %v2019 = vpop.f32.mrf.mxu0
    %v2020 = vadd.f32 %v2002, %v2019
    %v2021 = vpop.f32.mrf.mxu0
    %v2022 = vadd.f32 %v2004, %v2021
    %2023 = vmatmul.bf16.gmra.mxu0 %v1251
    %v2024 = vpop.f32.mrf.mxu0
    %v2025 = vadd.f32 %v2007, %v2024
    %v2026 = vpop.f32.mrf.mxu0
    %2027 = vdwg.mxu0
    %v2028 = vrcp.pop %v2025
    %v2029 = vperm.slane %v2028, 0
    %v2030 = vmul.f32 %v2020, %v2029
    %v2031 = vmul.f32 %v2022, %v2029
    %v2032 = vmax.f32 %v2030, 0.0
    %v2033 = vmax.f32 %v2031, 0.0
    %v2034 = vpack.c.bf16 %v2032, %v2032
    %v2035 = vpack.c.bf16 %v2033, %v2033
    %v2038 = vunpack.c.l.b16 %v2034
    %v2039 = vunpack.c.l.b16 %v2035
    %v2040 = vpack.c.b16 %v2039, %v2038
    %v2042 = vunpack.c.h.b16 %v1256
    %v2043 = vunpack.c.h.b16 %v1257
    %v2044 = vpack.c.b16 %v2043, %v2042
    %2046 = vmatpush.bf16.msra.mxu0 0
    %2047 = vmatpush.bf16.msra.mxu0 0
    %2048 = vmatpush.bf16.msra.mxu0 0
    %2049 = vmatpush.bf16.msra.mxu0 0
    %2050 = vmatpush.bf16.msra.mxu0 0
    %2051 = vmatpush.bf16.msra.mxu0 %v713
    %2052 = vmatpush.bf16.msra.mxu0 %v2044
    %2053 = vmatpush.bf16.msra.mxu0 %v2040
    %2054 = vmatmul.bf16.gmra.mxu0 %v704
    %v2055 = vpop.f32.mrf.mxu0
    %v2056 = vadd.f32 0.0, %v2055
    %v2057 = vpop.f32.mrf.mxu0
    %v2058 = vadd.f32 0.0, %v2057
    %2059 = vmatmul.bf16.gmra.mxu0 %v707
    %v2060 = vpop.f32.mrf.mxu0
    %v2061 = vadd.f32 0.0, %v2060
    %v2062 = vpop.f32.mrf.mxu0
    %v2063 = vadd.f32 0.0, %v2062
    %2064 = vdwg.mxu0
    %2065 = vst [vmem:[%s1697 + $0x8] sm:$0xff] %v2056
    %2066 = vst [vmem:[%s1697 + $0x18] sm:$0xff] %v2058
    %2067 = vst [vmem:[%s1697 + $0x28] sm:$0xff] %v2061
    %2068 = vst [vmem:[%s1697 + $0x38] sm:$0xff] %v2063
    // Predicated region
    $region22: #{tpu_custom_call.1} parent=1 // pred_check
      _
    $region23: #{tpu_custom_call.1} parent=1 // pred_check_branch
      %2070 = sbr.rel (0) target = $region25
    $region24: #{tpu_custom_call.1} parent=1 // pred_region
      %2072 = vsyncadd [#allocation4], 0
      %s2073 = sshll.u32 [#allocation5], 4
      %s2074 = int_to_ptr.vmem [resolvable:$true] %s2073
      %s2075 = sshll.u32 %s4, 4
      %s2076 = int_to_ptr.hbm [resolvable:$true] %s2075
      %2081 = dma.vmem_to_hbm [thread:$0]  %s2074, 2048, %s2076, [#allocation4], 256, 256, 16
    $region25: #{tpu_custom_call.1} parent=1 // pred_fallthru
      _
    // Predicated region
    $region26: #{tpu_custom_call.1} parent=1 // pred_check
      _
    $region27: #{tpu_custom_call.1} parent=1 // pred_check_branch
      %2083 = sbr.rel (0) target = $region29
    $region28: #{tpu_custom_call.1} parent=1 // pred_region
      %2085 = dma.done [#allocation4], 2048
    $region29: #{tpu_custom_call.1} parent=1 // pred_fallthru
      _
    %2086 = vsyncpa [#allocation3], 1
    %2087 = vsyncpa [#allocation4], 1

</llo_original>
